<compile_context>
chip_gen: v7x
topology: tpu7x:2x2x1
jax: 0.10.0
libtpu: 0.0.40
codegen_flags: <defaults>
</compile_context>

<pallas_src>
import jax
import jax.numpy as jnp
from jax.experimental import pallas as pl
from jax.experimental.pallas import tpu as pltpu


# ----------------------------- helpers -----------------------------
def _full_spec(shape):
    """Whole-array block, resident across the (vocab-tile) grid."""
    nd = len(shape)
    return pl.BlockSpec(shape, lambda j, ids_r: (0,) * nd)


def _fc_tile(out_size, max_tile=1024):
    """Vocab tile width for fc_out: multiple of 128 dividing O, capped for VMEM
    (v7x has only 64 MiB physical / 32 MiB scoped); fall back to a single tile
    for small / ragged vocabularies."""
    if out_size % 128 != 0:
        return out_size
    t = 128
    while t * 2 <= max_tile and out_size % (t * 2) == 0:
        t *= 2
    return min(t, out_size)


# ----------------------------- fused decoder-step kernel -----------------------------
def _make_kernel(L, B, S, H):
    E = 2 * H          # encoder feature width
    G = 3 * H          # gates per direction
    bf16 = jnp.bfloat16
    f32 = jnp.float32

    def kernel(ids_ref, *refs):
        it = iter(refs)
        emb_ref = next(it)                                   # (V, 1, H) f32
        hid_ref = next(it)                                   # (2L, B, H) f32
        enc_ref = next(it)                                   # (B, S, 2H) f32
        awh_ref, awe_ref, ab_ref, av_ref = (next(it) for _ in range(4))
        gru_refs = [tuple(next(it) for _ in range(7)) for _ in range(L)]
        fcwf_ref, fcwb_ref, fcb_ref = (next(it) for _ in range(3))
        logits_ref = next(it)                                # (B, tn) f32  (vocab tile)
        hout_ref = next(it)                                  # (2L, B, H) f32 (VMEM resident)

        j = pl.program_id(0)

        # ---- state (attention + GRU) computed once, kept in hout_ref across vocab tiles ----
        @pl.when(j == 0)
        def _state():
            # embedding gather: token ids prefetched into SMEM, rows dynamically
            # indexed on the (non-tiled) leading axis of the table (no XLA gather op).
            embedded = jnp.concatenate(
                [emb_ref[ids_ref[b]] for b in range(B)], axis=0)            # (B, H) f32
            # self.dropout: identity at inference

            # ---------------- attention(hidden[-1], encoder_outputs) ----------------
            hid_last = hid_ref[2 * L - 1]                                   # (B, H)
            enc = enc_ref[...]                                              # (B, S, 2H)
            enc_flat = enc.reshape(B * S, E)       # leading-dim merge only; lane dim intact
            # attn Linear(3H -> H) split into [W_h | W_e] column blocks (no concat)
            e_h = jnp.dot(hid_last.astype(bf16), awh_ref[...],
                          preferred_element_type=f32)                       # (B, H)
            e_e = jnp.dot(enc_flat.astype(bf16), awe_ref[...],
                          preferred_element_type=f32).reshape(B, S, H)      # (B, S, H)
            energies = jnp.tanh(e_h[:, None, :] + e_e + ab_ref[...])        # (B, S, H)
            # v(.) score as a lane reduction (avoids a pathological N=1 matmul)
            scores = jnp.sum(energies * av_ref[...], axis=-1)               # (B, S)
            m = jnp.max(scores, axis=-1, keepdims=True)
            ex = jnp.exp(scores - m)
            attn_w = ex * pl.reciprocal(jnp.sum(ex, axis=-1, keepdims=True),
                                        approx=True)                        # (B, S)
            # context = attn_w^T @ enc : MXU batched contraction over S
            ctx = jnp.einsum("bqs,bse->bqe", attn_w[:, None, :], enc,
                             preferred_element_type=f32)[:, 0, :]           # (B, 2H)

            # -------- bidirectional GRU stack over the single decode step --------
            # rnn_input = cat(embedded, context) is kept as split "pieces"; the
            # consuming W_ih is split row-wise accordingly (no concat).
            pieces = [embedded, ctx]
            for l in range(L):
                w_p0, w_p1, whh_f, whh_b, bih, bhh_f, bhh_b = gru_refs[l]
                # one gi matmul feeding BOTH directions: columns = [fwd r,z,n | bwd r,z,n]
                gi = bih[...]                                               # (1, 6H) -> bcast
                for xp, w in zip(pieces, (w_p0, w_p1)):
                    gi = gi + jnp.dot(xp.astype(bf16), w[...],
                                      preferred_element_type=f32)           # (B, 6H)
                h_f = hid_ref[2 * l]
                h_b = hid_ref[2 * l + 1]
                gh_f = jnp.dot(h_f.astype(bf16), whh_f[...],
                               preferred_element_type=f32) + bhh_f[...]     # (B, 3H)
                gh_b = jnp.dot(h_b.astype(bf16), whh_b[...],
                               preferred_element_type=f32) + bhh_b[...]     # (B, 3H)

                def upd(gi_d, gh_d, h_d):
                    # PyTorch gate order r, z, n (f32 elementwise math)
                    r = jax.nn.sigmoid(gi_d[:, 0:H] + gh_d[:, 0:H])
                    z = jax.nn.sigmoid(gi_d[:, H:2 * H] + gh_d[:, H:2 * H])
                    n = jnp.tanh(gi_d[:, 2 * H:3 * H] + r * gh_d[:, 2 * H:3 * H])
                    return (1.0 - z) * n + z * h_d

                hf_new = upd(gi[:, :G], gh_f, h_f)
                hb_new = upd(gi[:, G:], gh_b, h_b)
                hout_ref[2 * l] = hf_new
                hout_ref[2 * l + 1] = hb_new
                # layer output = cat(fwd, bwd) kept split for the next layer / fc_out
                pieces = [hf_new, hb_new]
                # inter-layer GRU dropout: identity at inference

        # ---- fc_out for this vocab tile (every grid step; state read from resident hout) ----
        hf_last = hout_ref[2 * (L - 1)]                                     # (B, H)
        hb_last = hout_ref[2 * L - 1]                                       # (B, H)
        logits_ref[...] = (
            jnp.dot(hf_last.astype(bf16), fcwf_ref[...], preferred_element_type=f32)
            + jnp.dot(hb_last.astype(bf16), fcwb_ref[...], preferred_element_type=f32)
            + fcb_ref[...])

    return kernel


# ----------------------------- wrapper -----------------------------
def decoder_forward(params, x, hidden, encoder_outputs):
    """x: (B,1) int32; hidden: (2L,B,H); encoder_outputs: (B,S,2H) -> ((B,1,O), (2L,B,H))."""
    two_l, B, H = hidden.shape
    L = two_l // 2
    S = encoder_outputs.shape[1]
    O = params["fc_b"].shape[1]
    tn = _fc_tile(O)
    ids = x[:, 0].astype(jnp.int32)

    inputs = [params["embedding"], hidden, encoder_outputs,
              params["attn_wh_t"], params["attn_we_t"],
              params["attn_b"], params["attn_v"]]
    for l in range(L):
        k = f"gru_l{l}"
        inputs += [params[k + s] for s in
                   ("_w_in0", "_w_in1", "_whh_f", "_whh_b", "_bih", "_bhh_f", "_bhh_b")]
    fc_inputs = [params["fc_wf_t"], params["fc_wb_t"], params["fc_b"]]

    in_specs = [_full_spec(a.shape) for a in inputs] + [
        pl.BlockSpec((H, tn), lambda j, ids_r: (0, j)),    # fc_out weight (fwd half) tile
        pl.BlockSpec((H, tn), lambda j, ids_r: (0, j)),    # fc_out weight (bwd half) tile
        pl.BlockSpec((1, tn), lambda j, ids_r: (0, j)),    # fc_out bias tile
    ]
    out_specs = (
        pl.BlockSpec((B, tn), lambda j, ids_r: (0, j)),            # logits tile
        pl.BlockSpec((2 * L, B, H), lambda j, ids_r: (0, 0, 0)),   # new hidden (resident)
    )
    out_shape = (jax.ShapeDtypeStruct((B, O), jnp.float32),
                 jax.ShapeDtypeStruct((2 * L, B, H), jnp.float32))

    logits, h_n = pl.pallas_call(
        _make_kernel(L, B, S, H),
        out_shape=out_shape,
        grid_spec=pltpu.PrefetchScalarGridSpec(
            num_scalar_prefetch=1,        # token ids -> SMEM
            grid=(O // tn,),              # serial loop over vocab tiles
            in_specs=in_specs,
            out_specs=out_specs),
        compiler_params=pltpu.CompilerParams(
            # state is computed at grid step 0 and reused => sequential axis
            dimension_semantics=("arbitrary",)),
    )(ids, *inputs, *fc_inputs)

    return logits[:, None, :], h_n                                  # (B,1,O), (2L,B,H)


# ----------------------------- pure-JAX reference (same math, f32) -----------------------------
def decoder_forward_ref(params, x, hidden, encoder_outputs):
    f = lambda a: a.astype(jnp.float32)
    L = hidden.shape[0] // 2
    H = hidden.shape[2]
    emb_tab = params["embedding"][:, 0, :]
    embedded = emb_tab[x[:, 0]]
    hid_last = hidden[-1]
    enc = encoder_outputs
    e_h = hid_last @ f(params["attn_wh_t"])
    e_e = jnp.einsum("bse,eh->bsh", enc, f(params["attn_we_t"]))
    energies = jnp.tanh(e_h[:, None, :] + e_e + params["attn_b"])
    scores = jnp.sum(energies * params["attn_v"], axis=-1)
    attn_w = jax.nn.softmax(scores, axis=-1)
    ctx = jnp.einsum("bs,bse->be", attn_w, enc)
    pieces, new_h = [embedded, ctx], []
    for l in range(L):
        k = f"gru_l{l}"
        gi = params[k + "_bih"]
        for xp, w in zip(pieces, (params[k + "_w_in0"], params[k + "_w_in1"])):
            gi = gi + xp @ f(w)
        h_f, h_b = hidden[2 * l], hidden[2 * l + 1]
        gh_f = h_f @ f(params[k + "_whh_f"]) + params[k + "_bhh_f"]
        gh_b = h_b @ f(params[k + "_whh_b"]) + params[k + "_bhh_b"]

        def upd(gi_d, gh_d, h_d):
            r = jax.nn.sigmoid(gi_d[:, :H] + gh_d[:, :H])
            z = jax.nn.sigmoid(gi_d[:, H:2 * H] + gh_d[:, H:2 * H])
            n = jnp.tanh(gi_d[:, 2 * H:] + r * gh_d[:, 2 * H:])
            return (1.0 - z) * n + z * h_d

        hf, hb = upd(gi[:, :3 * H], gh_f, h_f), upd(gi[:, 3 * H:], gh_b, h_b)
        new_h += [hf, hb]
        pieces = [hf, hb]
    logits = (pieces[0] @ f(params["fc_wf_t"]) + pieces[1] @ f(params["fc_wb_t"])
              + params["fc_b"])
    return logits[:, None, :], jnp.stack(new_h, axis=0)


# ----------------------------- deterministic parameter init (kernel layout) -----------------------------
def init_params(key, output_size, hidden_size, num_layers):
    """Weights stored pre-transposed and pre-split for the fused kernel:
       attn (H,3H) -> [W_h^T (H,H), W_e^T (2H,H)];  GRU W_ih^T columns grouped
       [fwd r,z,n | bwd r,z,n] and rows split per input piece;  fc (O,2H) ->
       [W_fwd^T (H,O), W_bwd^T (H,O)].  MXU weights in bf16, biases/embedding f32."""
    H = hidden_size
    keys = iter(jax.random.split(key, 8 + 8 * num_layers))
    bf = jnp.bfloat16

    def rnd(shape, dtype=jnp.float32, scale=0.1):
        return (scale * jax.random.normal(next(keys), shape)).astype(dtype)

    p = {}
    p["embedding"] = rnd((output_size, 1, H))      # singleton axis -> cheap dynamic row index
    p["attn_wh_t"] = rnd((H, H), bf)
    p["attn_we_t"] = rnd((2 * H, H), bf)
    p["attn_b"] = rnd((1, H))
    p["attn_v"] = rnd((1, H))                      # v used via lane reduction (VPU), keep f32
    for l in range(num_layers):
        k = f"gru_l{l}"
        d1 = 2 * H if l == 0 else H                # piece1: context (layer0) / prev bwd (else)
        p[k + "_w_in0"] = rnd((H, 6 * H), bf)      # piece0: embedded (layer0) / prev fwd
        p[k + "_w_in1"] = rnd((d1, 6 * H), bf)
        p[k + "_whh_f"] = rnd((H, 3 * H), bf)
        p[k + "_whh_b"] = rnd((H, 3 * H), bf)
        p[k + "_bih"] = rnd((1, 6 * H))            # [bias_ih fwd | bias_ih bwd]
        p[k + "_bhh_f"] = rnd((1, 3 * H))
        p[k + "_bhh_b"] = rnd((1, 3 * H))
    p["fc_wf_t"] = rnd((H, output_size), bf)
    p["fc_wb_t"] = rnd((H, output_size), bf)
    p["fc_b"] = rnd((1, output_size))
    return p


if __name__ == "__main__":
    B, S, H, L, OUT = 2, 8, 32, 2, 16     # batch, enc seq len, hidden, num_layers, vocab

    key = jax.random.PRNGKey(0)
    k_x, k_h, k_e, k_p = jax.random.split(key, 4)
    params = init_params(k_p, OUT, H, L)

    x = jax.random.randint(k_x, (B, 1), 0, OUT, dtype=jnp.int32)
    hidden = jax.random.normal(k_h, (2 * L, B, H), dtype=jnp.float32)
    encoder_outputs = jax.random.normal(k_e, (B, S, 2 * H), dtype=jnp.float32)

    out, h_n = jax.jit(decoder_forward)(params, x, hidden, encoder_outputs)
    jax.block_until_ready((out, h_n))

    assert out.shape == (B, 1, OUT), out.shape
    assert h_n.shape == (2 * L, B, H), h_n.shape
    assert bool(jnp.all(jnp.isfinite(out))) and bool(jnp.all(jnp.isfinite(h_n)))

    # correctness vs. pure-JAX f32 reference (bf16 matmuls + approx reciprocal => loose tol)
    out_r, h_r = decoder_forward_ref(params, x, hidden, encoder_outputs)
    assert bool(jnp.allclose(out, out_r, atol=5e-2, rtol=5e-2)), \
        float(jnp.max(jnp.abs(out - out_r)))
    assert bool(jnp.allclose(h_n, h_r, atol=5e-2, rtol=5e-2)), \
        float(jnp.max(jnp.abs(h_n - h_r)))

    print("KERNEL_OK")
</pallas_src>

<mosaic_0001>
module attributes {stable_mosaic.version = 11 : i64} {
  func.func @kernel(%arg0: i32, %arg1: memref<2xi32, #tpu.memory_space<smem>>, %arg2: memref<16x1x32xf32, #tpu.memory_space<vmem>>, %arg3: memref<4x2x32xf32, #tpu.memory_space<vmem>>, %arg4: memref<2x8x64xf32, #tpu.memory_space<vmem>>, %arg5: memref<32x32xbf16, #tpu.memory_space<vmem>>, %arg6: memref<64x32xbf16, #tpu.memory_space<vmem>>, %arg7: memref<1x32xf32, #tpu.memory_space<vmem>>, %arg8: memref<1x32xf32, #tpu.memory_space<vmem>>, %arg9: memref<32x192xbf16, #tpu.memory_space<vmem>>, %arg10: memref<64x192xbf16, #tpu.memory_space<vmem>>, %arg11: memref<32x96xbf16, #tpu.memory_space<vmem>>, %arg12: memref<32x96xbf16, #tpu.memory_space<vmem>>, %arg13: memref<1x192xf32, #tpu.memory_space<vmem>>, %arg14: memref<1x96xf32, #tpu.memory_space<vmem>>, %arg15: memref<1x96xf32, #tpu.memory_space<vmem>>, %arg16: memref<32x192xbf16, #tpu.memory_space<vmem>>, %arg17: memref<32x192xbf16, #tpu.memory_space<vmem>>, %arg18: memref<32x96xbf16, #tpu.memory_space<vmem>>, %arg19: memref<32x96xbf16, #tpu.memory_space<vmem>>, %arg20: memref<1x192xf32, #tpu.memory_space<vmem>>, %arg21: memref<1x96xf32, #tpu.memory_space<vmem>>, %arg22: memref<1x96xf32, #tpu.memory_space<vmem>>, %arg23: memref<32x16xbf16, #tpu.memory_space<vmem>>, %arg24: memref<32x16xbf16, #tpu.memory_space<vmem>>, %arg25: memref<1x16xf32, #tpu.memory_space<vmem>>, %arg26: memref<2x16xf32, #tpu.memory_space<vmem>>, %arg27: memref<4x2x32xf32, #tpu.memory_space<vmem>>) attributes {dimension_semantics = [#tpu.dimension_semantics<arbitrary>], iteration_bounds = array<i64: 1>, scalar_prefetch = 1 : i64, scratch_operands = 0 : i64, tpu.core_type = #tpu.core_type<tc>, window_params = [{pipeline_mode = #tpu.pipeline_mode<synchronous>, transform_indices = @transform_0, window_bounds = array<i64: 16, 1, 32>}, {pipeline_mode = #tpu.pipeline_mode<synchronous>, transform_indices = @transform_1, window_bounds = array<i64: 4, 2, 32>}, {pipeline_mode = #tpu.pipeline_mode<synchronous>, transform_indices = @transform_2, window_bounds = array<i64: 2, 8, 64>}, {pipeline_mode = #tpu.pipeline_mode<synchronous>, transform_indices = @transform_3, window_bounds = array<i64: 32, 32>}, {pipeline_mode = #tpu.pipeline_mode<synchronous>, transform_indices = @transform_4, window_bounds = array<i64: 64, 32>}, {pipeline_mode = #tpu.pipeline_mode<synchronous>, transform_indices = @transform_5, window_bounds = array<i64: 1, 32>}, {pipeline_mode = #tpu.pipeline_mode<synchronous>, transform_indices = @transform_6, window_bounds = array<i64: 1, 32>}, {pipeline_mode = #tpu.pipeline_mode<synchronous>, transform_indices = @transform_7, window_bounds = array<i64: 32, 192>}, {pipeline_mode = #tpu.pipeline_mode<synchronous>, transform_indices = @transform_8, window_bounds = array<i64: 64, 192>}, {pipeline_mode = #tpu.pipeline_mode<synchronous>, transform_indices = @transform_9, window_bounds = array<i64: 32, 96>}, {pipeline_mode = #tpu.pipeline_mode<synchronous>, transform_indices = @transform_10, window_bounds = array<i64: 32, 96>}, {pipeline_mode = #tpu.pipeline_mode<synchronous>, transform_indices = @transform_11, window_bounds = array<i64: 1, 192>}, {pipeline_mode = #tpu.pipeline_mode<synchronous>, transform_indices = @transform_12, window_bounds = array<i64: 1, 96>}, {pipeline_mode = #tpu.pipeline_mode<synchronous>, transform_indices = @transform_13, window_bounds = array<i64: 1, 96>}, {pipeline_mode = #tpu.pipeline_mode<synchronous>, transform_indices = @transform_14, window_bounds = array<i64: 32, 192>}, {pipeline_mode = #tpu.pipeline_mode<synchronous>, transform_indices = @transform_15, window_bounds = array<i64: 32, 192>}, {pipeline_mode = #tpu.pipeline_mode<synchronous>, transform_indices = @transform_16, window_bounds = array<i64: 32, 96>}, {pipeline_mode = #tpu.pipeline_mode<synchronous>, transform_indices = @transform_17, window_bounds = array<i64: 32, 96>}, {pipeline_mode = #tpu.pipeline_mode<synchronous>, transform_indices = @transform_18, window_bounds = array<i64: 1, 192>}, {pipeline_mode = #tpu.pipeline_mode<synchronous>, transform_indices = @transform_19, window_bounds = array<i64: 1, 96>}, {pipeline_mode = #tpu.pipeline_mode<synchronous>, transform_indices = @transform_20, window_bounds = array<i64: 1, 96>}, {transform_indices = @transform_21, window_bounds = array<i64: 32, 16>}, {transform_indices = @transform_22, window_bounds = array<i64: 32, 16>}, {transform_indices = @transform_23, window_bounds = array<i64: 1, 16>}, {transform_indices = @transform_24, window_bounds = array<i64: 2, 16>}, {pipeline_mode = #tpu.pipeline_mode<synchronous>, transform_indices = @transform_25, window_bounds = array<i64: 4, 2, 32>}]} {
    %c0_i32 = arith.constant 0 : i32
    %0 = arith.cmpi eq, %arg0, %c0_i32 : i32
    %1 = arith.extui %0 : i1 to i32
    %c0_i32_0 = arith.constant 0 : i32
    %2 = arith.cmpi ne, %1, %c0_i32_0 : i32
    scf.if %2 {
      %c0_13 = arith.constant 0 : index
      %18 = memref.load %arg1[%c0_13] : memref<2xi32, #tpu.memory_space<smem>>
      %19 = arith.index_cast %18 : i32 to index
      %c0_14 = arith.constant 0 : index
      %c0_15 = arith.constant 0 : index
      %20 = vector.load %arg2[%19, %c0_14, %c0_15] : memref<16x1x32xf32, #tpu.memory_space<vmem>>, vector<1x1x32xf32>
      %21 = vector.shape_cast %20 : vector<1x1x32xf32> to vector<1x32xf32>
      %c1 = arith.constant 1 : index
      %22 = memref.load %arg1[%c1] : memref<2xi32, #tpu.memory_space<smem>>
      %23 = arith.index_cast %22 : i32 to index
      %c0_16 = arith.constant 0 : index
      %c0_17 = arith.constant 0 : index
      %24 = vector.load %arg2[%23, %c0_16, %c0_17] : memref<16x1x32xf32, #tpu.memory_space<vmem>>, vector<1x1x32xf32>
      %25 = vector.shape_cast %24 : vector<1x1x32xf32> to vector<1x32xf32>
      %26 = tpu.concatenate %21, %25 in 0 : vector<1x32xf32>, vector<1x32xf32> -> vector<2x32xf32>
      %c3_18 = arith.constant 3 : index
      %c0_19 = arith.constant 0 : index
      %c0_20 = arith.constant 0 : index
      %27 = vector.load %arg3[%c3_18, %c0_19, %c0_20] : memref<4x2x32xf32, #tpu.memory_space<vmem>>, vector<1x2x32xf32>
      %28 = vector.shape_cast %27 : vector<1x2x32xf32> to vector<2x32xf32>
      %c0_21 = arith.constant 0 : index
      %c0_22 = arith.constant 0 : index
      %c0_23 = arith.constant 0 : index
      %29 = vector.load %arg4[%c0_21, %c0_22, %c0_23] : memref<2x8x64xf32, #tpu.memory_space<vmem>>, vector<2x8x64xf32>
      %30 = vector.shape_cast %29 : vector<2x8x64xf32> to vector<16x64xf32>
      %31 = arith.truncf %28 : vector<2x32xf32> to vector<2x32xbf16>
      %c0_24 = arith.constant 0 : index
      %c0_25 = arith.constant 0 : index
      %32 = vector.load %arg5[%c0_24, %c0_25] : memref<32x32xbf16, #tpu.memory_space<vmem>>, vector<32x32xbf16>
      %cst_26 = arith.constant dense<0.000000e+00> : vector<2x32xf32>
      %33 = tpu.matmul %31, %32, %cst_26 {dimension_numbers = #tpu.dot_dimension_numbers<[1], [0], [0], [1], [0, 0, 1, 1], [], []>} : vector<2x32xbf16>, vector<32x32xbf16>, vector<2x32xf32> -> vector<2x32xf32>
      %34 = arith.truncf %30 : vector<16x64xf32> to vector<16x64xbf16>
      %c0_27 = arith.constant 0 : index
      %c0_28 = arith.constant 0 : index
      %35 = vector.load %arg6[%c0_27, %c0_28] : memref<64x32xbf16, #tpu.memory_space<vmem>>, vector<64x32xbf16>
      %cst_29 = arith.constant dense<0.000000e+00> : vector<16x32xf32>
      %36 = tpu.matmul %34, %35, %cst_29 {dimension_numbers = #tpu.dot_dimension_numbers<[1], [0], [0], [1], [0, 0, 1, 1], [], []>} : vector<16x64xbf16>, vector<64x32xbf16>, vector<16x32xf32> -> vector<16x32xf32>
      %37 = vector.shape_cast %36 : vector<16x32xf32> to vector<2x8x32xf32>
      %38 = vector.shape_cast %33 : vector<2x32xf32> to vector<2x1x32xf32>
      %39 = vector.broadcast %38 : vector<2x1x32xf32> to vector<2x8x32xf32>
      %40 = arith.addf %39, %37 : vector<2x8x32xf32>
      %c0_30 = arith.constant 0 : index
      %c0_31 = arith.constant 0 : index
      %41 = vector.load %arg7[%c0_30, %c0_31] : memref<1x32xf32, #tpu.memory_space<vmem>>, vector<1x32xf32>
      %42 = vector.shape_cast %41 : vector<1x32xf32> to vector<1x1x32xf32>
      %43 = vector.broadcast %42 : vector<1x1x32xf32> to vector<2x8x32xf32>
      %44 = arith.addf %40, %43 : vector<2x8x32xf32>
      %45 = math.tanh %44 : vector<2x8x32xf32>
      %c0_32 = arith.constant 0 : index
      %c0_33 = arith.constant 0 : index
      %46 = vector.load %arg8[%c0_32, %c0_33] : memref<1x32xf32, #tpu.memory_space<vmem>>, vector<1x32xf32>
      %47 = vector.shape_cast %46 : vector<1x32xf32> to vector<1x1x32xf32>
      %48 = vector.broadcast %47 : vector<1x1x32xf32> to vector<2x8x32xf32>
      %49 = arith.mulf %45, %48 : vector<2x8x32xf32>
      %cst_34 = arith.constant dense<0.000000e+00> : vector<2x8xf32>
      %50 = vector.multi_reduction <add>, %49, %cst_34 [2] : vector<2x8x32xf32> to vector<2x8xf32>
      %cst_35 = arith.constant dense<0xFF800000> : vector<2xf32>
      %51 = vector.multi_reduction <maximumf>, %50, %cst_35 [1] : vector<2x8xf32> to vector<2xf32>
      %52 = vector.shape_cast %51 : vector<2xf32> to vector<2x1xf32>
      %53 = vector.broadcast %52 : vector<2x1xf32> to vector<2x8xf32>
      %54 = arith.subf %50, %53 : vector<2x8xf32>
      %55 = math.exp %54 : vector<2x8xf32>
      %cst_36 = arith.constant dense<0.000000e+00> : vector<2xf32>
      %56 = vector.multi_reduction <add>, %55, %cst_36 [1] : vector<2x8xf32> to vector<2xf32>
      %57 = vector.shape_cast %56 : vector<2xf32> to vector<2x1xf32>
      %58 = tpu.reciprocal %57 {approx = true} : vector<2x1xf32> -> vector<2x1xf32>
      %59 = vector.broadcast %58 : vector<2x1xf32> to vector<2x8xf32>
      %60 = arith.mulf %55, %59 : vector<2x8xf32>
      %61 = vector.shape_cast %60 : vector<2x8xf32> to vector<2x1x8xf32>
      "tpu.trace_start"() <{level = 10 : i32, message = "bqs,bse->bqe"}> : () -> ()
      %cst_37 = arith.constant dense<0.000000e+00> : vector<2x1x64xf32>
      %62 = tpu.matmul %61, %29, %cst_37 {dimension_numbers = #tpu.dot_dimension_numbers<[2], [1], [1], [2], [0, 0, 0, 1, 1, 2], [0], [0]>} : vector<2x1x8xf32>, vector<2x8x64xf32>, vector<2x1x64xf32> -> vector<2x1x64xf32>
      "tpu.trace_stop"() : () -> ()
      %63 = vector.shape_cast %62 : vector<2x1x64xf32> to vector<2x64xf32>
      %c0_38 = arith.constant 0 : index
      %c0_39 = arith.constant 0 : index
      %64 = vector.load %arg13[%c0_38, %c0_39] : memref<1x192xf32, #tpu.memory_space<vmem>>, vector<1x192xf32>
      %65 = arith.truncf %26 : vector<2x32xf32> to vector<2x32xbf16>
      %c0_40 = arith.constant 0 : index
      %c0_41 = arith.constant 0 : index
      %66 = vector.load %arg9[%c0_40, %c0_41] : memref<32x192xbf16, #tpu.memory_space<vmem>>, vector<32x192xbf16>
      %cst_42 = arith.constant dense<0.000000e+00> : vector<2x192xf32>
      %67 = tpu.matmul %65, %66, %cst_42 {dimension_numbers = #tpu.dot_dimension_numbers<[1], [0], [0], [1], [0, 0, 1, 1], [], []>} : vector<2x32xbf16>, vector<32x192xbf16>, vector<2x192xf32> -> vector<2x192xf32>
      %68 = vector.broadcast %64 : vector<1x192xf32> to vector<2x192xf32>
      %69 = arith.addf %68, %67 : vector<2x192xf32>
      %70 = arith.truncf %63 : vector<2x64xf32> to vector<2x64xbf16>
      %c0_43 = arith.constant 0 : index
      %c0_44 = arith.constant 0 : index
      %71 = vector.load %arg10[%c0_43, %c0_44] : memref<64x192xbf16, #tpu.memory_space<vmem>>, vector<64x192xbf16>
      %cst_45 = arith.constant dense<0.000000e+00> : vector<2x192xf32>
      %72 = tpu.matmul %70, %71, %cst_45 {dimension_numbers = #tpu.dot_dimension_numbers<[1], [0], [0], [1], [0, 0, 1, 1], [], []>} : vector<2x64xbf16>, vector<64x192xbf16>, vector<2x192xf32> -> vector<2x192xf32>
      %73 = arith.addf %69, %72 : vector<2x192xf32>
      %c0_46 = arith.constant 0 : index
      %c0_47 = arith.constant 0 : index
      %c0_48 = arith.constant 0 : index
      %74 = vector.load %arg3[%c0_46, %c0_47, %c0_48] : memref<4x2x32xf32, #tpu.memory_space<vmem>>, vector<1x2x32xf32>
      %75 = vector.shape_cast %74 : vector<1x2x32xf32> to vector<2x32xf32>
      %c1_49 = arith.constant 1 : index
      %c0_50 = arith.constant 0 : index
      %c0_51 = arith.constant 0 : index
      %76 = vector.load %arg3[%c1_49, %c0_50, %c0_51] : memref<4x2x32xf32, #tpu.memory_space<vmem>>, vector<1x2x32xf32>
      %77 = vector.shape_cast %76 : vector<1x2x32xf32> to vector<2x32xf32>
      %78 = arith.truncf %75 : vector<2x32xf32> to vector<2x32xbf16>
      %c0_52 = arith.constant 0 : index
      %c0_53 = arith.constant 0 : index
      %79 = vector.load %arg11[%c0_52, %c0_53] : memref<32x96xbf16, #tpu.memory_space<vmem>>, vector<32x96xbf16>
      %cst_54 = arith.constant dense<0.000000e+00> : vector<2x96xf32>
      %80 = tpu.matmul %78, %79, %cst_54 {dimension_numbers = #tpu.dot_dimension_numbers<[1], [0], [0], [1], [0, 0, 1, 1], [], []>} : vector<2x32xbf16>, vector<32x96xbf16>, vector<2x96xf32> -> vector<2x96xf32>
      %c0_55 = arith.constant 0 : index
      %c0_56 = arith.constant 0 : index
      %81 = vector.load %arg14[%c0_55, %c0_56] : memref<1x96xf32, #tpu.memory_space<vmem>>, vector<1x96xf32>
      %82 = vector.broadcast %81 : vector<1x96xf32> to vector<2x96xf32>
      %83 = arith.addf %80, %82 : vector<2x96xf32>
      %84 = arith.truncf %77 : vector<2x32xf32> to vector<2x32xbf16>
      %c0_57 = arith.constant 0 : index
      %c0_58 = arith.constant 0 : index
      %85 = vector.load %arg12[%c0_57, %c0_58] : memref<32x96xbf16, #tpu.memory_space<vmem>>, vector<32x96xbf16>
      %cst_59 = arith.constant dense<0.000000e+00> : vector<2x96xf32>
      %86 = tpu.matmul %84, %85, %cst_59 {dimension_numbers = #tpu.dot_dimension_numbers<[1], [0], [0], [1], [0, 0, 1, 1], [], []>} : vector<2x32xbf16>, vector<32x96xbf16>, vector<2x96xf32> -> vector<2x96xf32>
      %c0_60 = arith.constant 0 : index
      %c0_61 = arith.constant 0 : index
      %87 = vector.load %arg15[%c0_60, %c0_61] : memref<1x96xf32, #tpu.memory_space<vmem>>, vector<1x96xf32>
      %88 = vector.broadcast %87 : vector<1x96xf32> to vector<2x96xf32>
      %89 = arith.addf %86, %88 : vector<2x96xf32>
      %90 = vector.extract_strided_slice %73 {offsets = [0, 0], sizes = [2, 96], strides = [1, 1]} : vector<2x192xf32> to vector<2x96xf32>
      %91 = vector.extract_strided_slice %90 {offsets = [0, 0], sizes = [2, 32], strides = [1, 1]} : vector<2x96xf32> to vector<2x32xf32>
      %92 = vector.extract_strided_slice %83 {offsets = [0, 0], sizes = [2, 32], strides = [1, 1]} : vector<2x96xf32> to vector<2x32xf32>
      %93 = arith.addf %91, %92 : vector<2x32xf32>
      %94 = arith.negf %93 : vector<2x32xf32>
      %95 = math.exp %94 : vector<2x32xf32>
      %cst_62 = arith.constant 1.000000e+00 : f32
      %96 = vector.broadcast %cst_62 : f32 to vector<2x32xf32>
      %97 = arith.addf %96, %95 : vector<2x32xf32>
      %98 = arith.divf %96, %97 : vector<2x32xf32>
      %99 = vector.extract_strided_slice %90 {offsets = [0, 32], sizes = [2, 32], strides = [1, 1]} : vector<2x96xf32> to vector<2x32xf32>
      %100 = vector.extract_strided_slice %83 {offsets = [0, 32], sizes = [2, 32], strides = [1, 1]} : vector<2x96xf32> to vector<2x32xf32>
      %101 = arith.addf %99, %100 : vector<2x32xf32>
      %102 = arith.negf %101 : vector<2x32xf32>
      %103 = math.exp %102 : vector<2x32xf32>
      %cst_63 = arith.constant 1.000000e+00 : f32
      %104 = vector.broadcast %cst_63 : f32 to vector<2x32xf32>
      %105 = arith.addf %104, %103 : vector<2x32xf32>
      %106 = arith.divf %104, %105 : vector<2x32xf32>
      %107 = vector.extract_strided_slice %90 {offsets = [0, 64], sizes = [2, 32], strides = [1, 1]} : vector<2x96xf32> to vector<2x32xf32>
      %108 = vector.extract_strided_slice %83 {offsets = [0, 64], sizes = [2, 32], strides = [1, 1]} : vector<2x96xf32> to vector<2x32xf32>
      %109 = arith.mulf %98, %108 : vector<2x32xf32>
      %110 = arith.addf %107, %109 : vector<2x32xf32>
      %111 = math.tanh %110 : vector<2x32xf32>
      %cst_64 = arith.constant 1.000000e+00 : f32
      %112 = vector.broadcast %cst_64 : f32 to vector<2x32xf32>
      %113 = arith.subf %112, %106 : vector<2x32xf32>
      %114 = arith.mulf %113, %111 : vector<2x32xf32>
      %115 = arith.mulf %106, %75 : vector<2x32xf32>
      %116 = arith.addf %114, %115 : vector<2x32xf32>
      %117 = vector.extract_strided_slice %73 {offsets = [0, 96], sizes = [2, 96], strides = [1, 1]} : vector<2x192xf32> to vector<2x96xf32>
      %118 = vector.extract_strided_slice %117 {offsets = [0, 0], sizes = [2, 32], strides = [1, 1]} : vector<2x96xf32> to vector<2x32xf32>
      %119 = vector.extract_strided_slice %89 {offsets = [0, 0], sizes = [2, 32], strides = [1, 1]} : vector<2x96xf32> to vector<2x32xf32>
      %120 = arith.addf %118, %119 : vector<2x32xf32>
      %121 = arith.negf %120 : vector<2x32xf32>
      %122 = math.exp %121 : vector<2x32xf32>
      %cst_65 = arith.constant 1.000000e+00 : f32
      %123 = vector.broadcast %cst_65 : f32 to vector<2x32xf32>
      %124 = arith.addf %123, %122 : vector<2x32xf32>
      %125 = arith.divf %123, %124 : vector<2x32xf32>
      %126 = vector.extract_strided_slice %117 {offsets = [0, 32], sizes = [2, 32], strides = [1, 1]} : vector<2x96xf32> to vector<2x32xf32>
      %127 = vector.extract_strided_slice %89 {offsets = [0, 32], sizes = [2, 32], strides = [1, 1]} : vector<2x96xf32> to vector<2x32xf32>
      %128 = arith.addf %126, %127 : vector<2x32xf32>
      %129 = arith.negf %128 : vector<2x32xf32>
      %130 = math.exp %129 : vector<2x32xf32>
      %cst_66 = arith.constant 1.000000e+00 : f32
      %131 = vector.broadcast %cst_66 : f32 to vector<2x32xf32>
      %132 = arith.addf %131, %130 : vector<2x32xf32>
      %133 = arith.divf %131, %132 : vector<2x32xf32>
      %134 = vector.extract_strided_slice %117 {offsets = [0, 64], sizes = [2, 32], strides = [1, 1]} : vector<2x96xf32> to vector<2x32xf32>
      %135 = vector.extract_strided_slice %89 {offsets = [0, 64], sizes = [2, 32], strides = [1, 1]} : vector<2x96xf32> to vector<2x32xf32>
      %136 = arith.mulf %125, %135 : vector<2x32xf32>
      %137 = arith.addf %134, %136 : vector<2x32xf32>
      %138 = math.tanh %137 : vector<2x32xf32>
      %cst_67 = arith.constant 1.000000e+00 : f32
      %139 = vector.broadcast %cst_67 : f32 to vector<2x32xf32>
      %140 = arith.subf %139, %133 : vector<2x32xf32>
      %141 = arith.mulf %140, %138 : vector<2x32xf32>
      %142 = arith.mulf %133, %77 : vector<2x32xf32>
      %143 = arith.addf %141, %142 : vector<2x32xf32>
      %c0_68 = arith.constant 0 : index
      %c0_69 = arith.constant 0 : index
      %c0_70 = arith.constant 0 : index
      %144 = vector.load %arg27[%c0_68, %c0_69, %c0_70] : memref<4x2x32xf32, #tpu.memory_space<vmem>>, vector<1x2x32xf32>
      %145 = vector.shape_cast %144 : vector<1x2x32xf32> to vector<2x32xf32>
      %146 = vector.shape_cast %116 : vector<2x32xf32> to vector<1x2x32xf32>
      tpu.vector_store %arg27[%c0_68, %c0_69, %c0_70], %146 {strides = array<i32>} : memref<4x2x32xf32, #tpu.memory_space<vmem>>, vector<1x2x32xf32>,
      %c1_71 = arith.constant 1 : index
      %c0_72 = arith.constant 0 : index
      %c0_73 = arith.constant 0 : index
      %147 = vector.load %arg27[%c1_71, %c0_72, %c0_73] : memref<4x2x32xf32, #tpu.memory_space<vmem>>, vector<1x2x32xf32>
      %148 = vector.shape_cast %147 : vector<1x2x32xf32> to vector<2x32xf32>
      %149 = vector.shape_cast %143 : vector<2x32xf32> to vector<1x2x32xf32>
      tpu.vector_store %arg27[%c1_71, %c0_72, %c0_73], %149 {strides = array<i32>} : memref<4x2x32xf32, #tpu.memory_space<vmem>>, vector<1x2x32xf32>,
      %c0_74 = arith.constant 0 : index
      %c0_75 = arith.constant 0 : index
      %150 = vector.load %arg20[%c0_74, %c0_75] : memref<1x192xf32, #tpu.memory_space<vmem>>, vector<1x192xf32>
      %151 = arith.truncf %116 : vector<2x32xf32> to vector<2x32xbf16>
      %c0_76 = arith.constant 0 : index
      %c0_77 = arith.constant 0 : index
      %152 = vector.load %arg16[%c0_76, %c0_77] : memref<32x192xbf16, #tpu.memory_space<vmem>>, vector<32x192xbf16>
      %cst_78 = arith.constant dense<0.000000e+00> : vector<2x192xf32>
      %153 = tpu.matmul %151, %152, %cst_78 {dimension_numbers = #tpu.dot_dimension_numbers<[1], [0], [0], [1], [0, 0, 1, 1], [], []>} : vector<2x32xbf16>, vector<32x192xbf16>, vector<2x192xf32> -> vector<2x192xf32>
      %154 = vector.broadcast %150 : vector<1x192xf32> to vector<2x192xf32>
      %155 = arith.addf %154, %153 : vector<2x192xf32>
      %156 = arith.truncf %143 : vector<2x32xf32> to vector<2x32xbf16>
      %c0_79 = arith.constant 0 : index
      %c0_80 = arith.constant 0 : index
      %157 = vector.load %arg17[%c0_79, %c0_80] : memref<32x192xbf16, #tpu.memory_space<vmem>>, vector<32x192xbf16>
      %cst_81 = arith.constant dense<0.000000e+00> : vector<2x192xf32>
      %158 = tpu.matmul %156, %157, %cst_81 {dimension_numbers = #tpu.dot_dimension_numbers<[1], [0], [0], [1], [0, 0, 1, 1], [], []>} : vector<2x32xbf16>, vector<32x192xbf16>, vector<2x192xf32> -> vector<2x192xf32>
      %159 = arith.addf %155, %158 : vector<2x192xf32>
      %c2_82 = arith.constant 2 : index
      %c0_83 = arith.constant 0 : index
      %c0_84 = arith.constant 0 : index
      %160 = vector.load %arg3[%c2_82, %c0_83, %c0_84] : memref<4x2x32xf32, #tpu.memory_space<vmem>>, vector<1x2x32xf32>
      %161 = vector.shape_cast %160 : vector<1x2x32xf32> to vector<2x32xf32>
      %c3_85 = arith.constant 3 : index
      %c0_86 = arith.constant 0 : index
      %c0_87 = arith.constant 0 : index
      %162 = vector.load %arg3[%c3_85, %c0_86, %c0_87] : memref<4x2x32xf32, #tpu.memory_space<vmem>>, vector<1x2x32xf32>
      %163 = vector.shape_cast %162 : vector<1x2x32xf32> to vector<2x32xf32>
      %164 = arith.truncf %161 : vector<2x32xf32> to vector<2x32xbf16>
      %c0_88 = arith.constant 0 : index
      %c0_89 = arith.constant 0 : index
      %165 = vector.load %arg18[%c0_88, %c0_89] : memref<32x96xbf16, #tpu.memory_space<vmem>>, vector<32x96xbf16>
      %cst_90 = arith.constant dense<0.000000e+00> : vector<2x96xf32>
      %166 = tpu.matmul %164, %165, %cst_90 {dimension_numbers = #tpu.dot_dimension_numbers<[1], [0], [0], [1], [0, 0, 1, 1], [], []>} : vector<2x32xbf16>, vector<32x96xbf16>, vector<2x96xf32> -> vector<2x96xf32>
      %c0_91 = arith.constant 0 : index
      %c0_92 = arith.constant 0 : index
      %167 = vector.load %arg21[%c0_91, %c0_92] : memref<1x96xf32, #tpu.memory_space<vmem>>, vector<1x96xf32>
      %168 = vector.broadcast %167 : vector<1x96xf32> to vector<2x96xf32>
      %169 = arith.addf %166, %168 : vector<2x96xf32>
      %170 = arith.truncf %163 : vector<2x32xf32> to vector<2x32xbf16>
      %c0_93 = arith.constant 0 : index
      %c0_94 = arith.constant 0 : index
      %171 = vector.load %arg19[%c0_93, %c0_94] : memref<32x96xbf16, #tpu.memory_space<vmem>>, vector<32x96xbf16>
      %cst_95 = arith.constant dense<0.000000e+00> : vector<2x96xf32>
      %172 = tpu.matmul %170, %171, %cst_95 {dimension_numbers = #tpu.dot_dimension_numbers<[1], [0], [0], [1], [0, 0, 1, 1], [], []>} : vector<2x32xbf16>, vector<32x96xbf16>, vector<2x96xf32> -> vector<2x96xf32>
      %c0_96 = arith.constant 0 : index
      %c0_97 = arith.constant 0 : index
      %173 = vector.load %arg22[%c0_96, %c0_97] : memref<1x96xf32, #tpu.memory_space<vmem>>, vector<1x96xf32>
      %174 = vector.broadcast %173 : vector<1x96xf32> to vector<2x96xf32>
      %175 = arith.addf %172, %174 : vector<2x96xf32>
      %176 = vector.extract_strided_slice %159 {offsets = [0, 0], sizes = [2, 96], strides = [1, 1]} : vector<2x192xf32> to vector<2x96xf32>
      %177 = vector.extract_strided_slice %176 {offsets = [0, 0], sizes = [2, 32], strides = [1, 1]} : vector<2x96xf32> to vector<2x32xf32>
      %178 = vector.extract_strided_slice %169 {offsets = [0, 0], sizes = [2, 32], strides = [1, 1]} : vector<2x96xf32> to vector<2x32xf32>
      %179 = arith.addf %177, %178 : vector<2x32xf32>
      %180 = arith.negf %179 : vector<2x32xf32>
      %181 = math.exp %180 : vector<2x32xf32>
      %cst_98 = arith.constant 1.000000e+00 : f32
      %182 = vector.broadcast %cst_98 : f32 to vector<2x32xf32>
      %183 = arith.addf %182, %181 : vector<2x32xf32>
      %184 = arith.divf %182, %183 : vector<2x32xf32>
      %185 = vector.extract_strided_slice %176 {offsets = [0, 32], sizes = [2, 32], strides = [1, 1]} : vector<2x96xf32> to vector<2x32xf32>
      %186 = vector.extract_strided_slice %169 {offsets = [0, 32], sizes = [2, 32], strides = [1, 1]} : vector<2x96xf32> to vector<2x32xf32>
      %187 = arith.addf %185, %186 : vector<2x32xf32>
      %188 = arith.negf %187 : vector<2x32xf32>
      %189 = math.exp %188 : vector<2x32xf32>
      %cst_99 = arith.constant 1.000000e+00 : f32
      %190 = vector.broadcast %cst_99 : f32 to vector<2x32xf32>
      %191 = arith.addf %190, %189 : vector<2x32xf32>
      %192 = arith.divf %190, %191 : vector<2x32xf32>
      %193 = vector.extract_strided_slice %176 {offsets = [0, 64], sizes = [2, 32], strides = [1, 1]} : vector<2x96xf32> to vector<2x32xf32>
      %194 = vector.extract_strided_slice %169 {offsets = [0, 64], sizes = [2, 32], strides = [1, 1]} : vector<2x96xf32> to vector<2x32xf32>
      %195 = arith.mulf %184, %194 : vector<2x32xf32>
      %196 = arith.addf %193, %195 : vector<2x32xf32>
      %197 = math.tanh %196 : vector<2x32xf32>
      %cst_100 = arith.constant 1.000000e+00 : f32
      %198 = vector.broadcast %cst_100 : f32 to vector<2x32xf32>
      %199 = arith.subf %198, %192 : vector<2x32xf32>
      %200 = arith.mulf %199, %197 : vector<2x32xf32>
      %201 = arith.mulf %192, %161 : vector<2x32xf32>
      %202 = arith.addf %200, %201 : vector<2x32xf32>
      %203 = vector.extract_strided_slice %159 {offsets = [0, 96], sizes = [2, 96], strides = [1, 1]} : vector<2x192xf32> to vector<2x96xf32>
      %204 = vector.extract_strided_slice %203 {offsets = [0, 0], sizes = [2, 32], strides = [1, 1]} : vector<2x96xf32> to vector<2x32xf32>
      %205 = vector.extract_strided_slice %175 {offsets = [0, 0], sizes = [2, 32], strides = [1, 1]} : vector<2x96xf32> to vector<2x32xf32>
      %206 = arith.addf %204, %205 : vector<2x32xf32>
      %207 = arith.negf %206 : vector<2x32xf32>
      %208 = math.exp %207 : vector<2x32xf32>
      %cst_101 = arith.constant 1.000000e+00 : f32
      %209 = vector.broadcast %cst_101 : f32 to vector<2x32xf32>
      %210 = arith.addf %209, %208 : vector<2x32xf32>
      %211 = arith.divf %209, %210 : vector<2x32xf32>
      %212 = vector.extract_strided_slice %203 {offsets = [0, 32], sizes = [2, 32], strides = [1, 1]} : vector<2x96xf32> to vector<2x32xf32>
      %213 = vector.extract_strided_slice %175 {offsets = [0, 32], sizes = [2, 32], strides = [1, 1]} : vector<2x96xf32> to vector<2x32xf32>
      %214 = arith.addf %212, %213 : vector<2x32xf32>
      %215 = arith.negf %214 : vector<2x32xf32>
      %216 = math.exp %215 : vector<2x32xf32>
      %cst_102 = arith.constant 1.000000e+00 : f32
      %217 = vector.broadcast %cst_102 : f32 to vector<2x32xf32>
      %218 = arith.addf %217, %216 : vector<2x32xf32>
      %219 = arith.divf %217, %218 : vector<2x32xf32>
      %220 = vector.extract_strided_slice %203 {offsets = [0, 64], sizes = [2, 32], strides = [1, 1]} : vector<2x96xf32> to vector<2x32xf32>
      %221 = vector.extract_strided_slice %175 {offsets = [0, 64], sizes = [2, 32], strides = [1, 1]} : vector<2x96xf32> to vector<2x32xf32>
      %222 = arith.mulf %211, %221 : vector<2x32xf32>
      %223 = arith.addf %220, %222 : vector<2x32xf32>
      %224 = math.tanh %223 : vector<2x32xf32>
      %cst_103 = arith.constant 1.000000e+00 : f32
      %225 = vector.broadcast %cst_103 : f32 to vector<2x32xf32>
      %226 = arith.subf %225, %219 : vector<2x32xf32>
      %227 = arith.mulf %226, %224 : vector<2x32xf32>
      %228 = arith.mulf %219, %163 : vector<2x32xf32>
      %229 = arith.addf %227, %228 : vector<2x32xf32>
      %c2_104 = arith.constant 2 : index
      %c0_105 = arith.constant 0 : index
      %c0_106 = arith.constant 0 : index
      %230 = vector.load %arg27[%c2_104, %c0_105, %c0_106] : memref<4x2x32xf32, #tpu.memory_space<vmem>>, vector<1x2x32xf32>
      %231 = vector.shape_cast %230 : vector<1x2x32xf32> to vector<2x32xf32>
      %232 = vector.shape_cast %202 : vector<2x32xf32> to vector<1x2x32xf32>
      tpu.vector_store %arg27[%c2_104, %c0_105, %c0_106], %232 {strides = array<i32>} : memref<4x2x32xf32, #tpu.memory_space<vmem>>, vector<1x2x32xf32>,
      %c3_107 = arith.constant 3 : index
      %c0_108 = arith.constant 0 : index
      %c0_109 = arith.constant 0 : index
      %233 = vector.load %arg27[%c3_107, %c0_108, %c0_109] : memref<4x2x32xf32, #tpu.memory_space<vmem>>, vector<1x2x32xf32>
      %234 = vector.shape_cast %233 : vector<1x2x32xf32> to vector<2x32xf32>
      %235 = vector.shape_cast %229 : vector<2x32xf32> to vector<1x2x32xf32>
      tpu.vector_store %arg27[%c3_107, %c0_108, %c0_109], %235 {strides = array<i32>} : memref<4x2x32xf32, #tpu.memory_space<vmem>>, vector<1x2x32xf32>,
    } else {
    }
    %c2 = arith.constant 2 : index
    %c0 = arith.constant 0 : index
    %c0_1 = arith.constant 0 : index
    %3 = vector.load %arg27[%c2, %c0, %c0_1] : memref<4x2x32xf32, #tpu.memory_space<vmem>>, vector<1x2x32xf32>
    %4 = vector.shape_cast %3 : vector<1x2x32xf32> to vector<2x32xf32>
    %c3 = arith.constant 3 : index
    %c0_2 = arith.constant 0 : index
    %c0_3 = arith.constant 0 : index
    %5 = vector.load %arg27[%c3, %c0_2, %c0_3] : memref<4x2x32xf32, #tpu.memory_space<vmem>>, vector<1x2x32xf32>
    %6 = vector.shape_cast %5 : vector<1x2x32xf32> to vector<2x32xf32>
    %7 = arith.truncf %4 : vector<2x32xf32> to vector<2x32xbf16>
    %c0_4 = arith.constant 0 : index
    %c0_5 = arith.constant 0 : index
    %8 = vector.load %arg23[%c0_4, %c0_5] : memref<32x16xbf16, #tpu.memory_space<vmem>>, vector<32x16xbf16>
    %cst = arith.constant dense<0.000000e+00> : vector<2x16xf32>
    %9 = tpu.matmul %7, %8, %cst {dimension_numbers = #tpu.dot_dimension_numbers<[1], [0], [0], [1], [0, 0, 1, 1], [], []>} : vector<2x32xbf16>, vector<32x16xbf16>, vector<2x16xf32> -> vector<2x16xf32>
    %10 = arith.truncf %6 : vector<2x32xf32> to vector<2x32xbf16>
    %c0_6 = arith.constant 0 : index
    %c0_7 = arith.constant 0 : index
    %11 = vector.load %arg24[%c0_6, %c0_7] : memref<32x16xbf16, #tpu.memory_space<vmem>>, vector<32x16xbf16>
    %cst_8 = arith.constant dense<0.000000e+00> : vector<2x16xf32>
    %12 = tpu.matmul %10, %11, %cst_8 {dimension_numbers = #tpu.dot_dimension_numbers<[1], [0], [0], [1], [0, 0, 1, 1], [], []>} : vector<2x32xbf16>, vector<32x16xbf16>, vector<2x16xf32> -> vector<2x16xf32>
    %13 = arith.addf %9, %12 : vector<2x16xf32>
    %c0_9 = arith.constant 0 : index
    %c0_10 = arith.constant 0 : index
    %14 = vector.load %arg25[%c0_9, %c0_10] : memref<1x16xf32, #tpu.memory_space<vmem>>, vector<1x16xf32>
    %15 = vector.broadcast %14 : vector<1x16xf32> to vector<2x16xf32>
    %16 = arith.addf %13, %15 : vector<2x16xf32>
    %c0_11 = arith.constant 0 : index
    %c0_12 = arith.constant 0 : index
    %17 = vector.load %arg26[%c0_11, %c0_12] : memref<2x16xf32, #tpu.memory_space<vmem>>, vector<2x16xf32>
    tpu.vector_store %arg26[%c0_11, %c0_12], %16 {strides = array<i32>} : memref<2x16xf32, #tpu.memory_space<vmem>>, vector<2x16xf32>,
    return
  }
  func.func @transform_0(%arg0: i32, %arg1: memref<2xi32, #tpu.memory_space<smem>>) -> (i32, i32, i32) {
    %c0_i32 = arith.constant 0 : i32
    %c0_i32_0 = arith.constant 0 : i32
    %c0_i32_1 = arith.constant 0 : i32
    %c0_i32_2 = arith.constant 0 : i32
    return %c0_i32, %c0_i32_0, %c0_i32_1 : i32, i32, i32
  }
  func.func @transform_1(%arg0: i32, %arg1: memref<2xi32, #tpu.memory_space<smem>>) -> (i32, i32, i32) {
    %c0_i32 = arith.constant 0 : i32
    %c0_i32_0 = arith.constant 0 : i32
    %c0_i32_1 = arith.constant 0 : i32
    %c0_i32_2 = arith.constant 0 : i32
    return %c0_i32, %c0_i32_0, %c0_i32_1 : i32, i32, i32
  }
  func.func @transform_2(%arg0: i32, %arg1: memref<2xi32, #tpu.memory_space<smem>>) -> (i32, i32, i32) {
    %c0_i32 = arith.constant 0 : i32
    %c0_i32_0 = arith.constant 0 : i32
    %c0_i32_1 = arith.constant 0 : i32
    %c0_i32_2 = arith.constant 0 : i32
    return %c0_i32, %c0_i32_0, %c0_i32_1 : i32, i32, i32
  }
  func.func @transform_3(%arg0: i32, %arg1: memref<2xi32, #tpu.memory_space<smem>>) -> (i32, i32) {
    %c0_i32 = arith.constant 0 : i32
    %c0_i32_0 = arith.constant 0 : i32
    %c0_i32_1 = arith.constant 0 : i32
    return %c0_i32, %c0_i32_0 : i32, i32
  }
  func.func @transform_4(%arg0: i32, %arg1: memref<2xi32, #tpu.memory_space<smem>>) -> (i32, i32) {
    %c0_i32 = arith.constant 0 : i32
    %c0_i32_0 = arith.constant 0 : i32
    %c0_i32_1 = arith.constant 0 : i32
    return %c0_i32, %c0_i32_0 : i32, i32
  }
  func.func @transform_5(%arg0: i32, %arg1: memref<2xi32, #tpu.memory_space<smem>>) -> (i32, i32) {
    %c0_i32 = arith.constant 0 : i32
    %c0_i32_0 = arith.constant 0 : i32
    %c0_i32_1 = arith.constant 0 : i32
    return %c0_i32, %c0_i32_0 : i32, i32
  }
  func.func @transform_6(%arg0: i32, %arg1: memref<2xi32, #tpu.memory_space<smem>>) -> (i32, i32) {
    %c0_i32 = arith.constant 0 : i32
    %c0_i32_0 = arith.constant 0 : i32
    %c0_i32_1 = arith.constant 0 : i32
    return %c0_i32, %c0_i32_0 : i32, i32
  }
  func.func @transform_7(%arg0: i32, %arg1: memref<2xi32, #tpu.memory_space<smem>>) -> (i32, i32) {
    %c0_i32 = arith.constant 0 : i32
    %c0_i32_0 = arith.constant 0 : i32
    %c0_i32_1 = arith.constant 0 : i32
    return %c0_i32, %c0_i32_0 : i32, i32
  }
  func.func @transform_8(%arg0: i32, %arg1: memref<2xi32, #tpu.memory_space<smem>>) -> (i32, i32) {
    %c0_i32 = arith.constant 0 : i32
    %c0_i32_0 = arith.constant 0 : i32
    %c0_i32_1 = arith.constant 0 : i32
    return %c0_i32, %c0_i32_0 : i32, i32
  }
  func.func @transform_9(%arg0: i32, %arg1: memref<2xi32, #tpu.memory_space<smem>>) -> (i32, i32) {
    %c0_i32 = arith.constant 0 : i32
    %c0_i32_0 = arith.constant 0 : i32
    %c0_i32_1 = arith.constant 0 : i32
    return %c0_i32, %c0_i32_0 : i32, i32
  }
  func.func @transform_10(%arg0: i32, %arg1: memref<2xi32, #tpu.memory_space<smem>>) -> (i32, i32) {
    %c0_i32 = arith.constant 0 : i32
    %c0_i32_0 = arith.constant 0 : i32
    %c0_i32_1 = arith.constant 0 : i32
    return %c0_i32, %c0_i32_0 : i32, i32
  }
  func.func @transform_11(%arg0: i32, %arg1: memref<2xi32, #tpu.memory_space<smem>>) -> (i32, i32) {
    %c0_i32 = arith.constant 0 : i32
    %c0_i32_0 = arith.constant 0 : i32
    %c0_i32_1 = arith.constant 0 : i32
    return %c0_i32, %c0_i32_0 : i32, i32
  }
  func.func @transform_12(%arg0: i32, %arg1: memref<2xi32, #tpu.memory_space<smem>>) -> (i32, i32) {
    %c0_i32 = arith.constant 0 : i32
    %c0_i32_0 = arith.constant 0 : i32
    %c0_i32_1 = arith.constant 0 : i32
    return %c0_i32, %c0_i32_0 : i32, i32
  }
  func.func @transform_13(%arg0: i32, %arg1: memref<2xi32, #tpu.memory_space<smem>>) -> (i32, i32) {
    %c0_i32 = arith.constant 0 : i32
    %c0_i32_0 = arith.constant 0 : i32
    %c0_i32_1 = arith.constant 0 : i32
    return %c0_i32, %c0_i32_0 : i32, i32
  }
  func.func @transform_14(%arg0: i32, %arg1: memref<2xi32, #tpu.memory_space<smem>>) -> (i32, i32) {
    %c0_i32 = arith.constant 0 : i32
    %c0_i32_0 = arith.constant 0 : i32
    %c0_i32_1 = arith.constant 0 : i32
    return %c0_i32, %c0_i32_0 : i32, i32
  }
  func.func @transform_15(%arg0: i32, %arg1: memref<2xi32, #tpu.memory_space<smem>>) -> (i32, i32) {
    %c0_i32 = arith.constant 0 : i32
    %c0_i32_0 = arith.constant 0 : i32
    %c0_i32_1 = arith.constant 0 : i32
    return %c0_i32, %c0_i32_0 : i32, i32
  }
  func.func @transform_16(%arg0: i32, %arg1: memref<2xi32, #tpu.memory_space<smem>>) -> (i32, i32) {
    %c0_i32 = arith.constant 0 : i32
    %c0_i32_0 = arith.constant 0 : i32
    %c0_i32_1 = arith.constant 0 : i32
    return %c0_i32, %c0_i32_0 : i32, i32
  }
  func.func @transform_17(%arg0: i32, %arg1: memref<2xi32, #tpu.memory_space<smem>>) -> (i32, i32) {
    %c0_i32 = arith.constant 0 : i32
    %c0_i32_0 = arith.constant 0 : i32
    %c0_i32_1 = arith.constant 0 : i32
    return %c0_i32, %c0_i32_0 : i32, i32
  }
  func.func @transform_18(%arg0: i32, %arg1: memref<2xi32, #tpu.memory_space<smem>>) -> (i32, i32) {
    %c0_i32 = arith.constant 0 : i32
    %c0_i32_0 = arith.constant 0 : i32
    %c0_i32_1 = arith.constant 0 : i32
    return %c0_i32, %c0_i32_0 : i32, i32
  }
  func.func @transform_19(%arg0: i32, %arg1: memref<2xi32, #tpu.memory_space<smem>>) -> (i32, i32) {
    %c0_i32 = arith.constant 0 : i32
    %c0_i32_0 = arith.constant 0 : i32
    %c0_i32_1 = arith.constant 0 : i32
    return %c0_i32, %c0_i32_0 : i32, i32
  }
  func.func @transform_20(%arg0: i32, %arg1: memref<2xi32, #tpu.memory_space<smem>>) -> (i32, i32) {
    %c0_i32 = arith.constant 0 : i32
    %c0_i32_0 = arith.constant 0 : i32
    %c0_i32_1 = arith.constant 0 : i32
    return %c0_i32, %c0_i32_0 : i32, i32
  }
  func.func @transform_21(%arg0: i32, %arg1: memref<2xi32, #tpu.memory_space<smem>>) -> (i32, i32) {
    %c0_i32 = arith.constant 0 : i32
    %c0_i32_0 = arith.constant 0 : i32
    return %c0_i32, %arg0 : i32, i32
  }
  func.func @transform_22(%arg0: i32, %arg1: memref<2xi32, #tpu.memory_space<smem>>) -> (i32, i32) {
    %c0_i32 = arith.constant 0 : i32
    %c0_i32_0 = arith.constant 0 : i32
    return %c0_i32, %arg0 : i32, i32
  }
  func.func @transform_23(%arg0: i32, %arg1: memref<2xi32, #tpu.memory_space<smem>>) -> (i32, i32) {
    %c0_i32 = arith.constant 0 : i32
    %c0_i32_0 = arith.constant 0 : i32
    return %c0_i32, %arg0 : i32, i32
  }
  func.func @transform_24(%arg0: i32, %arg1: memref<2xi32, #tpu.memory_space<smem>>) -> (i32, i32) {
    %c0_i32 = arith.constant 0 : i32
    %c0_i32_0 = arith.constant 0 : i32
    return %c0_i32, %arg0 : i32, i32
  }
  func.func @transform_25(%arg0: i32, %arg1: memref<2xi32, #tpu.memory_space<smem>>) -> (i32, i32, i32) {
    %c0_i32 = arith.constant 0 : i32
    %c0_i32_0 = arith.constant 0 : i32
    %c0_i32_1 = arith.constant 0 : i32
    %c0_i32_2 = arith.constant 0 : i32
    return %c0_i32, %c0_i32_0, %c0_i32_1 : i32, i32, i32
  }
}

</mosaic_0001>

<llo_original>
// kernel: decoder_forward.1
$region0: #{decoder_forward.1}
  #allocation0 [shape = 'u32[]', space=smem, size = 0x4, offset = 0x4, fixed_abs, tag = 'smem constant byte address 0x4 - core index']
  #allocation1 [shape = 'u32[144,128]{1,0:T(1,128)}', space=vmem, size = 0x12000, scoped, tag = 'internal scratch']
  #allocation2 [shape = 's32[1]{0}', space=sflag, size = 0x4, scoped, tag = 'scoped memory for decoder_forward.1']
  #allocation3 [shape = 'u8[512]{0}', space=smem, size = 0x200, scoped, tag = 'prefetched SMEM operand 0']
  %s0 = inlined_call_operand.hbm [shape: s32[2], index: 0, kind: input, shape index: {}]
  %s1 = inlined_call_operand.hbm [shape: f32[16,1,32], index: 1, kind: input, shape index: {}]
  %s2 = inlined_call_operand.vmem [shape: f32[4,2,32], index: 2, kind: input, shape index: {}]
  %s3 = inlined_call_operand.vmem [shape: f32[2,8,64], index: 3, kind: input, shape index: {}]
  %s4 = inlined_call_operand.hbm [shape: bf16[32,32], index: 4, kind: input, shape index: {}]
  %s5 = inlined_call_operand.vmem [shape: bf16[64,32], index: 5, kind: input, shape index: {}]
  %s6 = inlined_call_operand.hbm [shape: f32[1,32], index: 6, kind: input, shape index: {}]
  %s7 = inlined_call_operand.hbm [shape: f32[1,32], index: 7, kind: input, shape index: {}]
  %s8 = inlined_call_operand.vmem [shape: bf16[32,192], index: 8, kind: input, shape index: {}]
  %s9 = inlined_call_operand.vmem [shape: bf16[64,192], index: 9, kind: input, shape index: {}]
  %s10 = inlined_call_operand.hbm [shape: bf16[32,96], index: 10, kind: input, shape index: {}]
  %s11 = inlined_call_operand.hbm [shape: bf16[32,96], index: 11, kind: input, shape index: {}]
  %s12 = inlined_call_operand.hbm [shape: f32[1,192], index: 12, kind: input, shape index: {}]
  %s13 = inlined_call_operand.hbm [shape: f32[1,96], index: 13, kind: input, shape index: {}]
  %s14 = inlined_call_operand.hbm [shape: f32[1,96], index: 14, kind: input, shape index: {}]
  %s15 = inlined_call_operand.vmem [shape: bf16[32,192], index: 15, kind: input, shape index: {}]
  %s16 = inlined_call_operand.vmem [shape: bf16[32,192], index: 16, kind: input, shape index: {}]
  %s17 = inlined_call_operand.hbm [shape: bf16[32,96], index: 17, kind: input, shape index: {}]
  %s18 = inlined_call_operand.hbm [shape: bf16[32,96], index: 18, kind: input, shape index: {}]
  %s19 = inlined_call_operand.vmem [shape: f32[1,192], index: 19, kind: input, shape index: {}]
  %s20 = inlined_call_operand.hbm [shape: f32[1,96], index: 20, kind: input, shape index: {}]
  %s21 = inlined_call_operand.hbm [shape: f32[1,96], index: 21, kind: input, shape index: {}]
  %s22 = inlined_call_operand.vmem [shape: bf16[32,16], index: 22, kind: input, shape index: {}]
  %s23 = inlined_call_operand.vmem [shape: bf16[32,16], index: 23, kind: input, shape index: {}]
  %s24 = inlined_call_operand.hbm [shape: f32[1,16], index: 24, kind: input, shape index: {}]
  %s25 = inlined_call_operand.hbm [shape: f32[2,16], index: 25, kind: output, shape index: {0}]
  %s26 = inlined_call_operand.hbm [shape: f32[4,2,32], index: 26, kind: output, shape index: {1}]
  %27 = xla_tuple %s25, %s26
  %s28 = sld [smem:[#allocation0]]
  $region174: #{decoder_forward.1} parent=0
    _
  %s30 = ssub.s32 1, %s28
  %s31 = scalar_select 0, %s30, %s28
  %33 = dma.hbm_to_smem %s0, 16, [#allocation3], [#allocation2]
  %34 = dma.done [#allocation2], 16
  %35 = sfence
  $region1: #{decoder_forward.1} parent=0
    #allocation4 [shape = 'u8[8192]{0}', space=vmem, size = 0x2000, scoped, tag = 'input window, operand 1, single buffered']
    #allocation5 [shape = 's32[1]{0}', space=sflag, size = 0x4, scoped, tag = 'scoped memory for decoder_forward.1']
    #allocation6 [shape = 's32[1]{0}', space=sflag, size = 0x4, scoped, tag = 'scoped memory for decoder_forward.1']
    #allocation7 [shape = 'u8[8192]{0}', space=vmem, size = 0x2000, scoped, tag = 'input window, operand 4, single buffered']
    #allocation8 [shape = 's32[1]{0}', space=sflag, size = 0x4, scoped, tag = 'scoped memory for decoder_forward.1']
    #allocation9 [shape = 'u8[512]{0}', space=vmem, size = 0x400, scoped, tag = 'input window, operand 6, single buffered']
    #allocation10 [shape = 'u8[512]{0}', space=vmem, size = 0x400, scoped, tag = 'input window, operand 7, single buffered']
    #allocation11 [shape = 's32[1]{0}', space=sflag, size = 0x4, scoped, tag = 'scoped memory for decoder_forward.1']
    #allocation12 [shape = 'u8[8192]{0}', space=vmem, size = 0x2000, scoped, tag = 'input window, operand 10, single buffered']
    #allocation13 [shape = 'u8[8192]{0}', space=vmem, size = 0x2000, scoped, tag = 'input window, operand 11, single buffered']
    #allocation14 [shape = 's32[1]{0}', space=sflag, size = 0x4, scoped, tag = 'scoped memory for decoder_forward.1']
    #allocation15 [shape = 'u8[1024]{0}', space=vmem, size = 0x400, scoped, tag = 'input window, operand 12, single buffered']
    #allocation16 [shape = 'u8[512]{0}', space=vmem, size = 0x400, scoped, tag = 'input window, operand 13, single buffered']
    #allocation17 [shape = 's32[1]{0}', space=sflag, size = 0x4, scoped, tag = 'scoped memory for decoder_forward.1']
    #allocation18 [shape = 'u8[512]{0}', space=vmem, size = 0x400, scoped, tag = 'input window, operand 14, single buffered']
    #allocation19 [shape = 'u8[8192]{0}', space=vmem, size = 0x2000, scoped, tag = 'input window, operand 17, single buffered']
    #allocation20 [shape = 's32[1]{0}', space=sflag, size = 0x4, scoped, tag = 'scoped memory for decoder_forward.1']
    #allocation21 [shape = 'u8[8192]{0}', space=vmem, size = 0x2000, scoped, tag = 'input window, operand 18, single buffered']
    #allocation22 [shape = 'u8[512]{0}', space=vmem, size = 0x400, scoped, tag = 'input window, operand 20, single buffered']
    #allocation23 [shape = 's32[1]{0}', space=sflag, size = 0x4, scoped, tag = 'scoped memory for decoder_forward.1']
    #allocation24 [shape = 'u8[512]{0}', space=vmem, size = 0x400, scoped, tag = 'input window, operand 21, single buffered']
    #allocation25 [shape = 'u8[512]{0}', space=vmem, size = 0x400, scoped, tag = 'input window, operand 24, single buffered']
    #allocation26 [shape = 's32[1]{0}', space=sflag, size = 0x4, scoped, tag = 'scoped memory for decoder_forward.1']
    #allocation27 [shape = 'u8[1024]{0}', space=vmem, size = 0x400, scoped, tag = 'output window, operand 0, single buffered']
    #allocation28 [shape = 'u8[4096]{0}', space=vmem, size = 0x1000, scoped, tag = 'output window, operand 1, single buffered']
    #allocation29 [shape = 's32[1]{0}', space=sflag, size = 0x4, scoped, tag = 'scoped memory for decoder_forward.1']
    %36 = vsyncpa [#allocation5], 0
    %37 = vsyncpa [#allocation8], 0
    %38 = vsyncpa [#allocation11], 0
    %39 = vsyncpa [#allocation14], 0
    %40 = vsyncpa [#allocation17], 0
    %41 = vsyncpa [#allocation20], 0
    %42 = vsyncpa [#allocation23], 0
    %43 = vsyncpa [#allocation26], 0
    %44 = vsyncpa [#allocation6], 0
    %45 = vsyncpa [#allocation29], 0
    // Predicated region
    $region2: #{decoder_forward.1} parent=1 // pred_check
      _
    $region3: #{decoder_forward.1} parent=1 // pred_check_branch
      %47 = sbr.rel (0) target = $region5
    $region4: #{decoder_forward.1} parent=1 // pred_region
      %s49 = ssub.s32 256, 256
      %50 = vsyncadd [#allocation5], %s49
      %s51 = sshll.u32 [#allocation4], 4
      %s52 = int_to_ptr.vmem [resolvable:$true] %s51
      %57 = dma.hbm_to_vmem [thread:$0]  %s1, 256, %s52, [#allocation5], 16, 16, 1
    $region5: #{decoder_forward.1} parent=1 // pred_fallthru
      _
    // Predicated region
    $region6: #{decoder_forward.1} parent=1 // pred_check
      _
    $region7: #{decoder_forward.1} parent=1 // pred_check_branch
      %59 = sbr.rel (0) target = $region9
    $region8: #{decoder_forward.1} parent=1 // pred_region
      _
    $region9: #{decoder_forward.1} parent=1 // pred_fallthru
      _
    // Predicated region
    $region10: #{decoder_forward.1} parent=1 // pred_check
      _
    $region11: #{decoder_forward.1} parent=1 // pred_check_branch
      %61 = sbr.rel (0) target = $region13
    $region12: #{decoder_forward.1} parent=1 // pred_region
      _
    $region13: #{decoder_forward.1} parent=1 // pred_fallthru
      _
    // Predicated region
    $region14: #{decoder_forward.1} parent=1 // pred_check
      _
    $region15: #{decoder_forward.1} parent=1 // pred_check_branch
      %63 = sbr.rel (0) target = $region17
    $region16: #{decoder_forward.1} parent=1 // pred_region
      %s65 = ssub.s32 256, 256
      %66 = vsyncadd [#allocation8], %s65
      %s67 = sshll.u32 [#allocation7], 4
      %s68 = int_to_ptr.vmem [resolvable:$true] %s67
      %73 = dma.hbm_to_vmem [thread:$0]  %s4, 256, %s68, [#allocation8], 64, 64, 4
    $region17: #{decoder_forward.1} parent=1 // pred_fallthru
      _
    // Predicated region
    $region18: #{decoder_forward.1} parent=1 // pred_check
      _
    $region19: #{decoder_forward.1} parent=1 // pred_check_branch
      %75 = sbr.rel (0) target = $region21
    $region20: #{decoder_forward.1} parent=1 // pred_region
      _
    $region21: #{decoder_forward.1} parent=1 // pred_fallthru
      _
    // Predicated region
    $region22: #{decoder_forward.1} parent=1 // pred_check
      _
    $region23: #{decoder_forward.1} parent=1 // pred_check_branch
      %77 = sbr.rel (0) target = $region25
    $region24: #{decoder_forward.1} parent=1 // pred_region
      %s79 = ssub.s32 16, 16
      %80 = vsyncadd [#allocation8], %s79
      %s82 = sshll.u32 [#allocation9], 4
      %s83 = int_to_ptr.vmem [resolvable:$true] %s82
      %85 = dma.hbm_to_vmem [thread:$0]  %s6, 16, %s83, [#allocation8]
    $region25: #{decoder_forward.1} parent=1 // pred_fallthru
      _
    // Predicated region
    $region26: #{decoder_forward.1} parent=1 // pred_check
      _
    $region27: #{decoder_forward.1} parent=1 // pred_check_branch
      %87 = sbr.rel (0) target = $region29
    $region28: #{decoder_forward.1} parent=1 // pred_region
      %s89 = ssub.s32 16, 16
      %90 = vsyncadd [#allocation11], %s89
      %s92 = sshll.u32 [#allocation10], 4
      %s93 = int_to_ptr.vmem [resolvable:$true] %s92
      %95 = dma.hbm_to_vmem [thread:$0]  %s7, 16, %s93, [#allocation11]
    $region29: #{decoder_forward.1} parent=1 // pred_fallthru
      _
    // Predicated region
    $region30: #{decoder_forward.1} parent=1 // pred_check
      _
    $region31: #{decoder_forward.1} parent=1 // pred_check_branch
      %97 = sbr.rel (0) target = $region33
    $region32: #{decoder_forward.1} parent=1 // pred_region
      _
    $region33: #{decoder_forward.1} parent=1 // pred_fallthru
      _
    // Predicated region
    $region34: #{decoder_forward.1} parent=1 // pred_check
      _
    $region35: #{decoder_forward.1} parent=1 // pred_check_branch
      %99 = sbr.rel (0) target = $region37
    $region36: #{decoder_forward.1} parent=1 // pred_region
      _
    $region37: #{decoder_forward.1} parent=1 // pred_fallthru
      _
    // Predicated region
    $region38: #{decoder_forward.1} parent=1 // pred_check
      _
    $region39: #{decoder_forward.1} parent=1 // pred_check_branch
      %101 = sbr.rel (0) target = $region41
    $region40: #{decoder_forward.1} parent=1 // pred_region
      %s103 = ssub.s32 256, 256
      %104 = vsyncadd [#allocation11], %s103
      %s105 = sshll.u32 [#allocation12], 4
      %s106 = int_to_ptr.vmem [resolvable:$true] %s105
      %111 = dma.hbm_to_vmem [thread:$0]  %s10, 256, %s106, [#allocation11], 64, 64, 4
    $region41: #{decoder_forward.1} parent=1 // pred_fallthru
      _
    // Predicated region
    $region42: #{decoder_forward.1} parent=1 // pred_check
      _
    $region43: #{decoder_forward.1} parent=1 // pred_check_branch
      %113 = sbr.rel (0) target = $region45
    $region44: #{decoder_forward.1} parent=1 // pred_region
      %s115 = ssub.s32 256, 256
      %116 = vsyncadd [#allocation14], %s115
      %s117 = sshll.u32 [#allocation13], 4
      %s118 = int_to_ptr.vmem [resolvable:$true] %s117
      %123 = dma.hbm_to_vmem [thread:$0]  %s11, 256, %s118, [#allocation14], 64, 64, 4
    $region45: #{decoder_forward.1} parent=1 // pred_fallthru
      _
    // Predicated region
    $region46: #{decoder_forward.1} parent=1 // pred_check
      _
    $region47: #{decoder_forward.1} parent=1 // pred_check_branch
      %125 = sbr.rel (0) target = $region49
    $region48: #{decoder_forward.1} parent=1 // pred_region
      %s127 = ssub.s32 32, 32
      %128 = vsyncadd [#allocation14], %s127
      %s130 = sshll.u32 [#allocation15], 4
      %s131 = int_to_ptr.vmem [resolvable:$true] %s130
      %133 = dma.hbm_to_vmem [thread:$0]  %s12, 32, %s131, [#allocation14]
    $region49: #{decoder_forward.1} parent=1 // pred_fallthru
      _
    // Predicated region
    $region50: #{decoder_forward.1} parent=1 // pred_check
      _
    $region51: #{decoder_forward.1} parent=1 // pred_check_branch
      %135 = sbr.rel (0) target = $region53
    $region52: #{decoder_forward.1} parent=1 // pred_region
      %s137 = ssub.s32 16, 16
      %138 = vsyncadd [#allocation17], %s137
      %s140 = sshll.u32 [#allocation16], 4
      %s141 = int_to_ptr.vmem [resolvable:$true] %s140
      %143 = dma.hbm_to_vmem [thread:$0]  %s13, 16, %s141, [#allocation17]
    $region53: #{decoder_forward.1} parent=1 // pred_fallthru
      _
    // Predicated region
    $region54: #{decoder_forward.1} parent=1 // pred_check
      _
    $region55: #{decoder_forward.1} parent=1 // pred_check_branch
      %145 = sbr.rel (0) target = $region57
    $region56: #{decoder_forward.1} parent=1 // pred_region
      %s147 = ssub.s32 16, 16
      %148 = vsyncadd [#allocation17], %s147
      %s150 = sshll.u32 [#allocation18], 4
      %s151 = int_to_ptr.vmem [resolvable:$true] %s150
      %153 = dma.hbm_to_vmem [thread:$0]  %s14, 16, %s151, [#allocation17]
    $region57: #{decoder_forward.1} parent=1 // pred_fallthru
      _
    // Predicated region
    $region58: #{decoder_forward.1} parent=1 // pred_check
      _
    $region59: #{decoder_forward.1} parent=1 // pred_check_branch
      %155 = sbr.rel (0) target = $region61
    $region60: #{decoder_forward.1} parent=1 // pred_region
      _
    $region61: #{decoder_forward.1} parent=1 // pred_fallthru
      _
    // Predicated region
    $region62: #{decoder_forward.1} parent=1 // pred_check
      _
    $region63: #{decoder_forward.1} parent=1 // pred_check_branch
      %157 = sbr.rel (0) target = $region65
    $region64: #{decoder_forward.1} parent=1 // pred_region
      _
    $region65: #{decoder_forward.1} parent=1 // pred_fallthru
      _
    // Predicated region
    $region66: #{decoder_forward.1} parent=1 // pred_check
      _
    $region67: #{decoder_forward.1} parent=1 // pred_check_branch
      %159 = sbr.rel (0) target = $region69
    $region68: #{decoder_forward.1} parent=1 // pred_region
      %s161 = ssub.s32 256, 256
      %162 = vsyncadd [#allocation20], %s161
      %s163 = sshll.u32 [#allocation19], 4
      %s164 = int_to_ptr.vmem [resolvable:$true] %s163
      %169 = dma.hbm_to_vmem [thread:$0]  %s17, 256, %s164, [#allocation20], 64, 64, 4
    $region69: #{decoder_forward.1} parent=1 // pred_fallthru
      _
    // Predicated region
    $region70: #{decoder_forward.1} parent=1 // pred_check
      _
    $region71: #{decoder_forward.1} parent=1 // pred_check_branch
      %171 = sbr.rel (0) target = $region73
    $region72: #{decoder_forward.1} parent=1 // pred_region
      %s173 = ssub.s32 256, 256
      %174 = vsyncadd [#allocation20], %s173
      %s175 = sshll.u32 [#allocation21], 4
      %s176 = int_to_ptr.vmem [resolvable:$true] %s175
      %181 = dma.hbm_to_vmem [thread:$0]  %s18, 256, %s176, [#allocation20], 64, 64, 4
    $region73: #{decoder_forward.1} parent=1 // pred_fallthru
      _
    // Predicated region
    $region74: #{decoder_forward.1} parent=1 // pred_check
      _
    $region75: #{decoder_forward.1} parent=1 // pred_check_branch
      %183 = sbr.rel (0) target = $region77
    $region76: #{decoder_forward.1} parent=1 // pred_region
      _
    $region77: #{decoder_forward.1} parent=1 // pred_fallthru
      _
    // Predicated region
    $region78: #{decoder_forward.1} parent=1 // pred_check
      _
    $region79: #{decoder_forward.1} parent=1 // pred_check_branch
      %185 = sbr.rel (0) target = $region81
    $region80: #{decoder_forward.1} parent=1 // pred_region
      %s187 = ssub.s32 16, 16
      %188 = vsyncadd [#allocation23], %s187
      %s190 = sshll.u32 [#allocation22], 4
      %s191 = int_to_ptr.vmem [resolvable:$true] %s190
      %193 = dma.hbm_to_vmem [thread:$0]  %s20, 16, %s191, [#allocation23]
    $region81: #{decoder_forward.1} parent=1 // pred_fallthru
      _
    // Predicated region
    $region82: #{decoder_forward.1} parent=1 // pred_check
      _
    $region83: #{decoder_forward.1} parent=1 // pred_check_branch
      %195 = sbr.rel (0) target = $region85
    $region84: #{decoder_forward.1} parent=1 // pred_region
      %s197 = ssub.s32 16, 16
      %198 = vsyncadd [#allocation23], %s197
      %s200 = sshll.u32 [#allocation24], 4
      %s201 = int_to_ptr.vmem [resolvable:$true] %s200
      %203 = dma.hbm_to_vmem [thread:$0]  %s21, 16, %s201, [#allocation23]
    $region85: #{decoder_forward.1} parent=1 // pred_fallthru
      _
    // Predicated region
    $region86: #{decoder_forward.1} parent=1 // pred_check
      _
    $region87: #{decoder_forward.1} parent=1 // pred_check_branch
      %205 = sbr.rel (0) target = $region89
    $region88: #{decoder_forward.1} parent=1 // pred_region
      _
    $region89: #{decoder_forward.1} parent=1 // pred_fallthru
      _
    // Predicated region
    $region90: #{decoder_forward.1} parent=1 // pred_check
      _
    $region91: #{decoder_forward.1} parent=1 // pred_check_branch
      %207 = sbr.rel (0) target = $region93
    $region92: #{decoder_forward.1} parent=1 // pred_region
      _
    $region93: #{decoder_forward.1} parent=1 // pred_fallthru
      _
    // Predicated region
    $region94: #{decoder_forward.1} parent=1 // pred_check
      _
    $region95: #{decoder_forward.1} parent=1 // pred_check_branch
      %209 = sbr.rel (0) target = $region97
    $region96: #{decoder_forward.1} parent=1 // pred_region
      %s211 = ssub.s32 16, 16
      %212 = vsyncadd [#allocation26], %s211
      %s214 = sshll.u32 [#allocation25], 4
      %s215 = int_to_ptr.vmem [resolvable:$true] %s214
      %217 = dma.hbm_to_vmem [thread:$0]  %s24, 16, %s215, [#allocation26]
    $region97: #{decoder_forward.1} parent=1 // pred_fallthru
      _
    // Predicated region
    $region98: #{decoder_forward.1} parent=1 // pred_check
      _
    $region99: #{decoder_forward.1} parent=1 // pred_check_branch
      %219 = sbr.rel (0) target = $region101
    $region100: #{decoder_forward.1} parent=1 // pred_region
      %220 = dma.done [#allocation5], 256
    $region101: #{decoder_forward.1} parent=1 // pred_fallthru
      _
    // Predicated region
    $region102: #{decoder_forward.1} parent=1 // pred_check
      _
    $region103: #{decoder_forward.1} parent=1 // pred_check_branch
      %222 = sbr.rel (0) target = $region105
    $region104: #{decoder_forward.1} parent=1 // pred_region
      %223 = dma.done [#allocation8], 256
    $region105: #{decoder_forward.1} parent=1 // pred_fallthru
      _
    // Predicated region
    $region106: #{decoder_forward.1} parent=1 // pred_check
      _
    $region107: #{decoder_forward.1} parent=1 // pred_check_branch
      %225 = sbr.rel (0) target = $region109
    $region108: #{decoder_forward.1} parent=1 // pred_region
      %226 = dma.done [#allocation8], 16
    $region109: #{decoder_forward.1} parent=1 // pred_fallthru
      _
    // Predicated region
    $region110: #{decoder_forward.1} parent=1 // pred_check
      _
    $region111: #{decoder_forward.1} parent=1 // pred_check_branch
      %228 = sbr.rel (0) target = $region113
    $region112: #{decoder_forward.1} parent=1 // pred_region
      %229 = dma.done [#allocation11], 16
    $region113: #{decoder_forward.1} parent=1 // pred_fallthru
      _
    // Predicated region
    $region114: #{decoder_forward.1} parent=1 // pred_check
      _
    $region115: #{decoder_forward.1} parent=1 // pred_check_branch
      %231 = sbr.rel (0) target = $region117
    $region116: #{decoder_forward.1} parent=1 // pred_region
      %232 = dma.done [#allocation11], 256
    $region117: #{decoder_forward.1} parent=1 // pred_fallthru
      _
    // Predicated region
    $region118: #{decoder_forward.1} parent=1 // pred_check
      _
    $region119: #{decoder_forward.1} parent=1 // pred_check_branch
      %234 = sbr.rel (0) target = $region121
    $region120: #{decoder_forward.1} parent=1 // pred_region
      %235 = dma.done [#allocation14], 256
    $region121: #{decoder_forward.1} parent=1 // pred_fallthru
      _
    // Predicated region
    $region122: #{decoder_forward.1} parent=1 // pred_check
      _
    $region123: #{decoder_forward.1} parent=1 // pred_check_branch
      %237 = sbr.rel (0) target = $region125
    $region124: #{decoder_forward.1} parent=1 // pred_region
      %238 = dma.done [#allocation14], 32
    $region125: #{decoder_forward.1} parent=1 // pred_fallthru
      _
    // Predicated region
    $region126: #{decoder_forward.1} parent=1 // pred_check
      _
    $region127: #{decoder_forward.1} parent=1 // pred_check_branch
      %240 = sbr.rel (0) target = $region129
    $region128: #{decoder_forward.1} parent=1 // pred_region
      %241 = dma.done [#allocation17], 16
    $region129: #{decoder_forward.1} parent=1 // pred_fallthru
      _
    // Predicated region
    $region130: #{decoder_forward.1} parent=1 // pred_check
      _
    $region131: #{decoder_forward.1} parent=1 // pred_check_branch
      %243 = sbr.rel (0) target = $region133
    $region132: #{decoder_forward.1} parent=1 // pred_region
      %244 = dma.done [#allocation17], 16
    $region133: #{decoder_forward.1} parent=1 // pred_fallthru
      _
    // Predicated region
    $region134: #{decoder_forward.1} parent=1 // pred_check
      _
    $region135: #{decoder_forward.1} parent=1 // pred_check_branch
      %246 = sbr.rel (0) target = $region137
    $region136: #{decoder_forward.1} parent=1 // pred_region
      %247 = dma.done [#allocation20], 256
    $region137: #{decoder_forward.1} parent=1 // pred_fallthru
      _
    // Predicated region
    $region138: #{decoder_forward.1} parent=1 // pred_check
      _
    $region139: #{decoder_forward.1} parent=1 // pred_check_branch
      %249 = sbr.rel (0) target = $region141
    $region140: #{decoder_forward.1} parent=1 // pred_region
      %250 = dma.done [#allocation20], 256
    $region141: #{decoder_forward.1} parent=1 // pred_fallthru
      _
    // Predicated region
    $region142: #{decoder_forward.1} parent=1 // pred_check
      _
    $region143: #{decoder_forward.1} parent=1 // pred_check_branch
      %252 = sbr.rel (0) target = $region145
    $region144: #{decoder_forward.1} parent=1 // pred_region
      %253 = dma.done [#allocation23], 16
    $region145: #{decoder_forward.1} parent=1 // pred_fallthru
      _
    // Predicated region
    $region146: #{decoder_forward.1} parent=1 // pred_check
      _
    $region147: #{decoder_forward.1} parent=1 // pred_check_branch
      %255 = sbr.rel (0) target = $region149
    $region148: #{decoder_forward.1} parent=1 // pred_region
      %256 = dma.done [#allocation23], 16
    $region149: #{decoder_forward.1} parent=1 // pred_fallthru
      _
    // Predicated region
    $region150: #{decoder_forward.1} parent=1 // pred_check
      _
    $region151: #{decoder_forward.1} parent=1 // pred_check_branch
      %258 = sbr.rel (0) target = $region153
    $region152: #{decoder_forward.1} parent=1 // pred_region
      %259 = dma.done [#allocation26], 16
    $region153: #{decoder_forward.1} parent=1 // pred_fallthru
      _
    %p261 = scmp.eq.s32.totalorder 0, 0
    // Predicated region
    $region154: #{decoder_forward.1} parent=1 // pred_check
      %p262 = pneg %p261
    $region155: #{decoder_forward.1} parent=1 // pred_check_branch
      %264 = sbr.rel (%p262) target = $region157
    $region156: #{decoder_forward.1} parent=1 // pred_region
      %s265 = sld [smem:[#allocation3]]
      %s266 = scalar_lea.vmem [#allocation4], %s265
      %v267 = vld [vmem:[%s266] sm:$0x1]
      %s268 = sld [smem:[#allocation3 + $0x1]]
      %s269 = scalar_lea.vmem [#allocation4], %s268
      %v270 = vld [vmem:[%s269] sm:$0x1]
      %v272 = vlaneseq
      %v273 = vshrl.u32 %v272, 7
      %v274 = vsub.s32 0, %v273
      %v275 = vrot.slane %v270, %v274
      %vm277 = vcmask 1040384
      %v278 = vsel %vm277, %v267, %v275
      %s279 = scalar_lea.vmem %s2, 6
      %v280 = vld [vmem:[%s279] sm:$0x3]
      %v281 = vld [vmem:[%s3] sm:$0xff]
      %v282 = vld [vmem:[%s3 + $0x8] sm:$0xff]
      %v283 = vpack.c.bf16 %v280, %v280
      %v284 = vld [vmem:[#allocation7] sm:$0xf]
      %v285 = vld [vmem:[#allocation7 + $0x4] sm:$0xf]
      %v286 = vld [vmem:[#allocation7 + $0x8] sm:$0xf]
      %v287 = vld [vmem:[#allocation7 + $0xc] sm:$0xf]
      %v292 = vunpack.c.l.b16 %v284
      %v293 = vunpack.c.l.b16 %v285
      %v294 = vunpack.c.l.b16 %v286
      %v295 = vunpack.c.l.b16 %v287
      %v296 = vpack.c.b16 %v293, %v292
      %v297 = vpack.c.b16 %v295, %v294
      %vm300 = vcmask 261120
      %v302 = vsel %vm300, %v283, 0
      %304 = vmatprep.subr.bf16.mxu0 0
      %305 = vmatpush1.bf16.msra.mxu0 %v296
      %306 = vmatprep.subr.bf16.mxu0 0
      %307 = vmatpush1.bf16.msra.mxu0 %v297
      %308 = vmatprep.subr.bf16.mxu0 0
      %309 = vmatpush1.bf16.msra.mxu0 0
      %310 = vmatprep.subr.bf16.mxu0 0
      %311 = vmatpush1.bf16.msra.mxu0 0
      %312 = vmatprep.subr.bf16.mxu0 0
      %313 = vmatpush1.bf16.msra.mxu0 0
      %314 = vmatprep.subr.bf16.mxu0 0
      %315 = vmatpush1.bf16.msra.mxu0 0
      %316 = vmatprep.subr.bf16.mxu0 0
      %317 = vmatpush1.bf16.msra.mxu0 0
      %318 = vmatprep.subr.bf16.mxu0 0
      %319 = vmatpush1.bf16.msra.mxu0 0
      %320 = vmatprep.subr.bf16.mxu0 0
      %321 = vmatpush1.bf16.msra.mxu0 0
      %322 = vmatprep.subr.bf16.mxu0 0
      %323 = vmatpush1.bf16.msra.mxu0 0
      %324 = vmatprep.subr.bf16.mxu0 0
      %325 = vmatpush1.bf16.msra.mxu0 0
      %326 = vmatprep.subr.bf16.mxu0 0
      %327 = vmatpush1.bf16.msra.mxu0 0
      %328 = vmatprep.subr.bf16.mxu0 0
      %329 = vmatpush1.bf16.msra.mxu0 0
      %330 = vmatprep.subr.bf16.mxu0 0
      %331 = vmatpush1.bf16.msra.mxu0 0
      %332 = vmatprep.subr.bf16.mxu0 0
      %333 = vmatpush1.bf16.msra.mxu0 0
      %334 = vmatprep.subr.bf16.mxu0 0
      %335 = vmatpush1.bf16.msra.mxu0 0
      %336 = vmatprep.mubr.bf16.mxu0 0
      %337 = vmatmul.mubr.bf16.gmra.mrb[0].mxu0 %v302
      %v338 = vpop.f32.mrb[0].mxu0
      %v339 = vadd.f32 0.0, %v338
      %v340 = vpop.f32.mrb[0].mxu0
      %v341 = vpop.f32.mrb[0].mxu0
      %v342 = vpop.f32.mrb[0].mxu0
      %343 = vdwg.mxu0
      %v344 = vpack.c.bf16 %v282, %v281
      %v345 = vld [vmem:[%s5] sm:$0xf]
      %v346 = vld [vmem:[%s5 + $0x4] sm:$0xf]
      %v347 = vld [vmem:[%s5 + $0x8] sm:$0xf]
      %v348 = vld [vmem:[%s5 + $0xc] sm:$0xf]
      %v349 = vld [vmem:[%s5 + $0x10] sm:$0xf]
      %v350 = vld [vmem:[%s5 + $0x14] sm:$0xf]
      %v351 = vld [vmem:[%s5 + $0x18] sm:$0xf]
      %v352 = vld [vmem:[%s5 + $0x1c] sm:$0xf]
      %v361 = vunpack.c.l.b16 %v345
      %v362 = vunpack.c.l.b16 %v346
      %v363 = vunpack.c.l.b16 %v347
      %v364 = vunpack.c.l.b16 %v348
      %v365 = vunpack.c.l.b16 %v349
      %v366 = vunpack.c.l.b16 %v350
      %v367 = vunpack.c.l.b16 %v351
      %v368 = vunpack.c.l.b16 %v352
      %v369 = vpack.c.b16 %v362, %v361
      %v370 = vpack.c.b16 %v364, %v363
      %v371 = vpack.c.b16 %v366, %v365
      %v372 = vpack.c.b16 %v368, %v367
      %vm377 = vcmask 523264
      %v379 = vsel %vm377, %v344, 0
      %381 = vmatprep.subr.bf16.mxu0 0
      %382 = vmatpush1.bf16.msra.mxu0 %v369
      %383 = vmatprep.subr.bf16.mxu0 0
      %384 = vmatpush1.bf16.msra.mxu0 %v370
      %385 = vmatprep.subr.bf16.mxu0 0
      %386 = vmatpush1.bf16.msra.mxu0 %v371
      %387 = vmatprep.subr.bf16.mxu0 0
      %388 = vmatpush1.bf16.msra.mxu0 %v372
      %389 = vmatprep.subr.bf16.mxu0 0
      %390 = vmatpush1.bf16.msra.mxu0 0
      %391 = vmatprep.subr.bf16.mxu0 0
      %392 = vmatpush1.bf16.msra.mxu0 0
      %393 = vmatprep.subr.bf16.mxu0 0
      %394 = vmatpush1.bf16.msra.mxu0 0
      %395 = vmatprep.subr.bf16.mxu0 0
      %396 = vmatpush1.bf16.msra.mxu0 0
      %397 = vmatprep.subr.bf16.mxu0 0
      %398 = vmatpush1.bf16.msra.mxu0 0
      %399 = vmatprep.subr.bf16.mxu0 0
      %400 = vmatpush1.bf16.msra.mxu0 0
      %401 = vmatprep.subr.bf16.mxu0 0
      %402 = vmatpush1.bf16.msra.mxu0 0
      %403 = vmatprep.subr.bf16.mxu0 0
      %404 = vmatpush1.bf16.msra.mxu0 0
      %405 = vmatprep.subr.bf16.mxu0 0
      %406 = vmatpush1.bf16.msra.mxu0 0
      %407 = vmatprep.subr.bf16.mxu0 0
      %408 = vmatpush1.bf16.msra.mxu0 0
      %409 = vmatprep.subr.bf16.mxu0 0
      %410 = vmatpush1.bf16.msra.mxu0 0
      %411 = vmatprep.subr.bf16.mxu0 0
      %412 = vmatpush1.bf16.msra.mxu0 0
      %413 = vmatprep.mubr.bf16.mxu0 0
      %414 = vmatmul.mubr.bf16.gmra.mrb[0].mxu0 %v379
      %v415 = vpop.f32.mrb[0].mxu0
      %v416 = vadd.f32 0.0, %v415
      %v417 = vpop.f32.mrb[0].mxu0
      %v418 = vpop.f32.mrb[0].mxu0
      %v419 = vadd.f32 0.0, %v418
      %v420 = vpop.f32.mrb[0].mxu0
      %421 = vdwg.mxu0
      %v424 = vunpack.c.l.s4 1966171168
      %v425 = vunpack.c.0.s8 %v424
      %v426 = vlaneseq
      %v427 = vshrl.u32 %v426, 7
      %v428 = vsub.s32 %v425, %v427
      %v429 = vrot.slane %v339, %v428
      %v430 = vcombine.high %v429, %v429
      %v432 = vunpack.c.l.s4 1966171168
      %v433 = vunpack.c.0.s8 %v432
      %v434 = vlaneseq
      %v435 = vshrl.u32 %v434, 7
      %v436 = vsub.s32 %v433, %v435
      %v437 = vrot.slane %v429, %v436
      %v439 = vunpack.c.l.s4 1966171168
      %v440 = vunpack.c.0.s8 %v439
      %v441 = vlaneseq
      %v442 = vshrl.u32 %v441, 7
      %v443 = vsub.s32 %v440, %v442
      %v444 = vrot.slane %v430, %v443
      %v445 = vlaneseq
      %v446 = vshrl.u32 %v445, 7
      %v447 = vsub.s32 0, %v446
      %v448 = vrot.slane %v437, %v447
      %v449 = vlaneseq
      %v450 = vshrl.u32 %v449, 7
      %v451 = vsub.s32 0, %v450
      %v452 = vrot.slane %v444, %v451
      %v455 = vadd.f32 %v448, %v416
      %v456 = vadd.f32 %v452, %v419
      %v457 = vld [vmem:[#allocation9] sm:$0x1]
      %v459 = vlaneseq
      %v460 = vshrl.u32 %v459, 7
      %v461 = vsub.s32 0, %v460
      %v462 = vrot.slane %v457, %v461
      %v464 = vadd.f32 %v455, %v462
      %v465 = vadd.f32 %v456, %v462
      %v466 = vtanh.pop %v464
      %v467 = vtanh.pop %v465
      %v468 = vld [vmem:[#allocation10] sm:$0x1]
      %v470 = vlaneseq
      %v471 = vshrl.u32 %v470, 7
      %v472 = vsub.s32 0, %v471
      %v473 = vrot.slane %v468, %v472
      %v475 = vmul.f32 %v466, %v473
      %v476 = vmul.f32 %v467, %v473
      %v477 = vsel %vm300, %v475, 0.0
      %478 = vadd.xlane.f32.xlu0 %v477
      %v479 = vpop.xlane.xlu0 %478
      %v480 = vsel %vm300, %v476, 0.0
      %481 = vadd.xlane.f32.xlu0 %v480
      %v482 = vpop.xlane.xlu0 %481
      %v485 = vlaneseq
      %v486 = vand.u32 %v485, 127
      %v487 = vlaneseq
      %v488 = vshrl.u32 %v487, 7
      %v489 = vsub.s32 %v486, %v488
      %v490 = vrot.slane %v479, %v489
      %v491 = vlaneseq
      %v492 = vshrl.u32 %v491, 7
      %v493 = vsub.s32 %v486, %v492
      %v494 = vrot.slane %v482, %v493
      %vm495 = vcmask 1041409
      %v496 = vsel %vm495, %v494, %v490
      %vm498 = vcmask 58368
      %v499 = vsel %vm498, %v496, -inf
      %500 = vmax.xlane.f32.xlu0 %v499
      %v501 = vpop.xlane.xlu0 %500
      %v503 = vlaneseq
      %v504 = vshrl.u32 %v503, 7
      %v505 = vsub.s32 0, %v504
      %v506 = vrot.slane %v501, %v505
      %v507 = vlaneseq
      %v508 = vshrl.u32 %v507, 7
      %v509 = vsub.s32 1, %v508
      %v510 = vrot.slane %v501, %v509
      %v513 = vsub.f32 %v479, %v506
      %v514 = vsub.f32 %v482, %v510
      %v515 = vmul.f32 %v513, 1.442695
      %v516 = vpow.pop %v515
      %v517 = vmul.f32 %v514, 1.442695
      %v518 = vpow.pop %v517
      %521 = vset.pattern.permute.xlu0 0
      %522 = vperm.xlu0 %521, %v516
      %v523 = vpop.permute.xlu0 %522
      %524 = vset.pattern.permute.xlu0 0
      %525 = vperm.xlu0 %524, %v518
      %v526 = vpop.permute.xlu0 %525
      %v527 = vlaneseq
      %v528 = vshrl.u32 %v527, 7
      %v529 = vsub.s32 %v486, %v528
      %v530 = vrot.slane %v523, %v529
      %v531 = vlaneseq
      %v532 = vshrl.u32 %v531, 7
      %v533 = vsub.s32 %v486, %v532
      %v534 = vrot.slane %v526, %v533
      %v535 = vsel %vm495, %v534, %v530
      %v537 = vsel %vm498, %v535, 0.0
      %538 = vadd.xlane.f32.xlu0 %v537
      %v539 = vpop.xlane.xlu0 %538
      %v540 = vrcp.pop %v539
      %v542 = vlaneseq
      %v543 = vshrl.u32 %v542, 7
      %v544 = vsub.s32 0, %v543
      %v545 = vrot.slane %v540, %v544
      %v546 = vlaneseq
      %v547 = vshrl.u32 %v546, 7
      %v548 = vsub.s32 1, %v547
      %v549 = vrot.slane %v540, %v548
      %v552 = vmul.f32 %v516, %v545
      %v553 = vmul.f32 %v518, %v549
      %555 = vset.pattern.permute.xlu0 0
      %556 = vperm.xlu0 %555, %v552
      %v557 = vpop.permute.xlu0 %556
      %v558 = vlaneseq
      %v559 = vshrl.u32 %v558, 7
      %v560 = vsub.s32 %v486, %v559
      %v561 = vrot.slane %v557, %v560
      %vm562 = vcmask 64512
      %v563 = vsel %vm562, %v561, 0
      %565 = vmatprep.subr.mxu0 0.0
      %566 = vmatpush1.msra.mxu0 %v281
      %567 = vmatprep.subr.mxu0 0.0
      %568 = vmatpush1.msra.mxu0 0.0
      %569 = vmatprep.subr.mxu0 0.0
      %570 = vmatpush1.msra.mxu0 0.0
      %571 = vmatprep.subr.mxu0 0.0
      %572 = vmatpush1.msra.mxu0 0.0
      %573 = vmatprep.subr.mxu0 0.0
      %574 = vmatpush1.msra.mxu0 0.0
      %575 = vmatprep.subr.mxu0 0.0
      %576 = vmatpush1.msra.mxu0 0.0
      %577 = vmatprep.subr.mxu0 0.0
      %578 = vmatpush1.msra.mxu0 0.0
      %579 = vmatprep.subr.mxu0 0.0
      %580 = vmatpush1.msra.mxu0 0.0
      %581 = vmatprep.subr.mxu0 0.0
      %582 = vmatpush1.msra.mxu0 0.0
      %583 = vmatprep.subr.mxu0 0.0
      %584 = vmatpush1.msra.mxu0 0.0
      %585 = vmatprep.subr.mxu0 0.0
      %586 = vmatpush1.msra.mxu0 0.0
      %587 = vmatprep.subr.mxu0 0.0
      %588 = vmatpush1.msra.mxu0 0.0
      %589 = vmatprep.subr.mxu0 0.0
      %590 = vmatpush1.msra.mxu0 0.0
      %591 = vmatprep.subr.mxu0 0.0
      %592 = vmatpush1.msra.mxu0 0.0
      %593 = vmatprep.subr.mxu0 0.0
      %594 = vmatpush1.msra.mxu0 0.0
      %595 = vmatprep.subr.mxu0 0.0
      %596 = vmatpush1.msra.mxu0 0.0
      %597 = vmatprep.subr.mxu0 0.0
      %598 = vmatpush1.msra.mxu0 0.0
      %599 = vmatprep.subr.mxu0 0.0
      %600 = vmatpush1.msra.mxu0 0.0
      %601 = vmatprep.subr.mxu0 0.0
      %602 = vmatpush1.msra.mxu0 0.0
      %603 = vmatprep.subr.mxu0 0.0
      %604 = vmatpush1.msra.mxu0 0.0
      %605 = vmatprep.subr.mxu0 0.0
      %606 = vmatpush1.msra.mxu0 0.0
      %607 = vmatprep.subr.mxu0 0.0
      %608 = vmatpush1.msra.mxu0 0.0
      %609 = vmatprep.subr.mxu0 0.0
      %610 = vmatpush1.msra.mxu0 0.0
      %611 = vmatprep.subr.mxu0 0.0
      %612 = vmatpush1.msra.mxu0 0.0
      %613 = vmatprep.subr.mxu0 0.0
      %614 = vmatpush1.msra.mxu0 0.0
      %615 = vmatprep.subr.mxu0 0.0
      %616 = vmatpush1.msra.mxu0 0.0
      %617 = vmatprep.subr.mxu0 0.0
      %618 = vmatpush1.msra.mxu0 0.0
      %619 = vmatprep.subr.mxu0 0.0
      %620 = vmatpush1.msra.mxu0 0.0
      %621 = vmatprep.subr.mxu0 0.0
      %622 = vmatpush1.msra.mxu0 0.0
      %623 = vmatprep.subr.mxu0 0.0
      %624 = vmatpush1.msra.mxu0 0.0
      %625 = vmatprep.subr.mxu0 0.0
      %626 = vmatpush1.msra.mxu0 0.0
      %627 = vmatprep.subr.mxu0 0.0
      %628 = vmatpush1.msra.mxu0 0.0
      %629 = vmatprep.mubr.f32.mxu0 0.0
      %630 = vmatmul.mubr.f32.gmra.mrb[0].mxu0 %v563
      %v631 = vpop.f32.mrb[0].mxu0
      %v632 = vadd.f32 0.0, %v631
      %v633 = vpop.f32.mrb[0].mxu0
      %634 = vdwg.mxu0
      %636 = vset.pattern.permute.xlu0 0
      %637 = vperm.xlu0 %636, %v553
      %v638 = vpop.permute.xlu0 %637
      %v639 = vlaneseq
      %v640 = vshrl.u32 %v639, 7
      %v641 = vsub.s32 %v486, %v640
      %v642 = vrot.slane %v638, %v641
      %v643 = vsel %vm562, %v642, 0
      %645 = vmatprep.subr.mxu0 0.0
      %646 = vmatpush1.msra.mxu0 %v282
      %647 = vmatprep.subr.mxu0 0.0
      %648 = vmatpush1.msra.mxu0 0.0
      %649 = vmatprep.subr.mxu0 0.0
      %650 = vmatpush1.msra.mxu0 0.0
      %651 = vmatprep.subr.mxu0 0.0
      %652 = vmatpush1.msra.mxu0 0.0
      %653 = vmatprep.subr.mxu0 0.0
      %654 = vmatpush1.msra.mxu0 0.0
      %655 = vmatprep.subr.mxu0 0.0
      %656 = vmatpush1.msra.mxu0 0.0
      %657 = vmatprep.subr.mxu0 0.0
      %658 = vmatpush1.msra.mxu0 0.0
      %659 = vmatprep.subr.mxu0 0.0
      %660 = vmatpush1.msra.mxu0 0.0
      %661 = vmatprep.subr.mxu0 0.0
      %662 = vmatpush1.msra.mxu0 0.0
      %663 = vmatprep.subr.mxu0 0.0
      %664 = vmatpush1.msra.mxu0 0.0
      %665 = vmatprep.subr.mxu0 0.0
      %666 = vmatpush1.msra.mxu0 0.0
      %667 = vmatprep.subr.mxu0 0.0
      %668 = vmatpush1.msra.mxu0 0.0
      %669 = vmatprep.subr.mxu0 0.0
      %670 = vmatpush1.msra.mxu0 0.0
      %671 = vmatprep.subr.mxu0 0.0
      %672 = vmatpush1.msra.mxu0 0.0
      %673 = vmatprep.subr.mxu0 0.0
      %674 = vmatpush1.msra.mxu0 0.0
      %675 = vmatprep.subr.mxu0 0.0
      %676 = vmatpush1.msra.mxu0 0.0
      %677 = vmatprep.subr.mxu0 0.0
      %678 = vmatpush1.msra.mxu0 0.0
      %679 = vmatprep.subr.mxu0 0.0
      %680 = vmatpush1.msra.mxu0 0.0
      %681 = vmatprep.subr.mxu0 0.0
      %682 = vmatpush1.msra.mxu0 0.0
      %683 = vmatprep.subr.mxu0 0.0
      %684 = vmatpush1.msra.mxu0 0.0
      %685 = vmatprep.subr.mxu0 0.0
      %686 = vmatpush1.msra.mxu0 0.0
      %687 = vmatprep.subr.mxu0 0.0
      %688 = vmatpush1.msra.mxu0 0.0
      %689 = vmatprep.subr.mxu0 0.0
      %690 = vmatpush1.msra.mxu0 0.0
      %691 = vmatprep.subr.mxu0 0.0
      %692 = vmatpush1.msra.mxu0 0.0
      %693 = vmatprep.subr.mxu0 0.0
      %694 = vmatpush1.msra.mxu0 0.0
      %695 = vmatprep.subr.mxu0 0.0
      %696 = vmatpush1.msra.mxu0 0.0
      %697 = vmatprep.subr.mxu0 0.0
      %698 = vmatpush1.msra.mxu0 0.0
      %699 = vmatprep.subr.mxu0 0.0
      %700 = vmatpush1.msra.mxu0 0.0
      %701 = vmatprep.subr.mxu0 0.0
      %702 = vmatpush1.msra.mxu0 0.0
      %703 = vmatprep.subr.mxu0 0.0
      %704 = vmatpush1.msra.mxu0 0.0
      %705 = vmatprep.subr.mxu0 0.0
      %706 = vmatpush1.msra.mxu0 0.0
      %707 = vmatprep.subr.mxu0 0.0
      %708 = vmatpush1.msra.mxu0 0.0
      %709 = vmatprep.mubr.f32.mxu0 0.0
      %710 = vmatmul.mubr.f32.gmra.mrb[0].mxu0 %v643
      %v711 = vpop.f32.mrb[0].mxu0
      %v712 = vadd.f32 0.0, %v711
      %v713 = vpop.f32.mrb[0].mxu0
      %714 = vdwg.mxu0
      %v715 = vld [vmem:[#allocation15] sm:$0x3]
      %v716 = vpack.c.bf16 %v278, %v278
      %v717 = vld [vmem:[%s8] sm:$0xff]
      %v718 = vld [vmem:[%s8 + $0x8] sm:$0xff]
      %v719 = vld [vmem:[%s8 + $0x10] sm:$0xff]
      %v720 = vld [vmem:[%s8 + $0x18] sm:$0xff]
      %v725 = vunpack.c.l.b16 %v717
      %v726 = vunpack.c.h.b16 %v717
      %v727 = vunpack.c.l.b16 %v718
      %v728 = vunpack.c.h.b16 %v718
      %v729 = vunpack.c.l.b16 %v719
      %v730 = vunpack.c.h.b16 %v719
      %v731 = vunpack.c.l.b16 %v720
      %v732 = vunpack.c.h.b16 %v720
      %v733 = vpack.c.b16 %v727, %v725
      %v734 = vpack.c.b16 %v728, %v726
      %v735 = vpack.c.b16 %v731, %v729
      %v736 = vpack.c.b16 %v732, %v730
      %v742 = vsel %vm300, %v716, 0
      %744 = vmatprep.subr.bf16.mxu0 %v734
      %745 = vmatpush1.bf16.msra.mxu0 %v733
      %746 = vmatprep.subr.bf16.mxu0 %v736
      %747 = vmatpush1.bf16.msra.mxu0 %v735
      %748 = vmatprep.subr.bf16.mxu0 0
      %749 = vmatpush1.bf16.msra.mxu0 0
      %750 = vmatprep.subr.bf16.mxu0 0
      %751 = vmatpush1.bf16.msra.mxu0 0
      %752 = vmatprep.subr.bf16.mxu0 0
      %753 = vmatpush1.bf16.msra.mxu0 0
      %754 = vmatprep.subr.bf16.mxu0 0
      %755 = vmatpush1.bf16.msra.mxu0 0
      %756 = vmatprep.subr.bf16.mxu0 0
      %757 = vmatpush1.bf16.msra.mxu0 0
      %758 = vmatprep.subr.bf16.mxu0 0
      %759 = vmatpush1.bf16.msra.mxu0 0
      %760 = vmatprep.subr.bf16.mxu0 0
      %761 = vmatpush1.bf16.msra.mxu0 0
      %762 = vmatprep.subr.bf16.mxu0 0
      %763 = vmatpush1.bf16.msra.mxu0 0
      %764 = vmatprep.subr.bf16.mxu0 0
      %765 = vmatpush1.bf16.msra.mxu0 0
      %766 = vmatprep.subr.bf16.mxu0 0
      %767 = vmatpush1.bf16.msra.mxu0 0
      %768 = vmatprep.subr.bf16.mxu0 0
      %769 = vmatpush1.bf16.msra.mxu0 0
      %770 = vmatprep.subr.bf16.mxu0 0
      %771 = vmatpush1.bf16.msra.mxu0 0
      %772 = vmatprep.subr.bf16.mxu0 0
      %773 = vmatpush1.bf16.msra.mxu0 0
      %774 = vmatprep.subr.bf16.mxu0 0
      %775 = vmatpush1.bf16.msra.mxu0 0
      %776 = vmatprep.mubr.bf16.mxu0 0
      %777 = vmatmul.mubr.bf16.gmra.mrb[0].mxu0 %v742
      %v778 = vpop.f32.mrb[0].mxu0
      %v779 = vadd.f32 0.0, %v778
      %v780 = vpop.f32.mrb[0].mxu0
      %v781 = vadd.f32 0.0, %v780
      %v782 = vpop.f32.mrb[0].mxu0
      %v783 = vpop.f32.mrb[0].mxu0
      %784 = vdwg.mxu0
      %v786 = vlaneseq
      %v787 = vshrl.u32 %v786, 7
      %v788 = vsub.s32 0, %v787
      %v789 = vrot.slane %v715, %v788
      %v790 = vlaneseq
      %v791 = vshrl.u32 %v790, 7
      %v792 = vsub.s32 1, %v791
      %v793 = vrot.slane %v715, %v792
      %v796 = vadd.f32 %v789, %v779
      %v797 = vadd.f32 %v793, %v781
      %v798 = vpack.c.bf16 %v632, %v632
      %v799 = vpack.c.bf16 %v712, %v712
      %v800 = vld [vmem:[%s9] sm:$0xff]
      %v801 = vld [vmem:[%s9 + $0x8] sm:$0xff]
      %v802 = vld [vmem:[%s9 + $0x10] sm:$0xff]
      %v803 = vld [vmem:[%s9 + $0x18] sm:$0xff]
      %v804 = vld [vmem:[%s9 + $0x20] sm:$0xff]
      %v805 = vld [vmem:[%s9 + $0x28] sm:$0xff]
      %v806 = vld [vmem:[%s9 + $0x30] sm:$0xff]
      %v807 = vld [vmem:[%s9 + $0x38] sm:$0xff]
      %v810 = vunpack.c.l.b16 %v798
      %v811 = vunpack.c.l.b16 %v799
      %v812 = vrot.slane %v811, 7
      %v813 = vsel %vm495, %v812, %v810
      %v814 = vpack.c.b16 %v813, %v813
      %v823 = vunpack.c.l.b16 %v800
      %v824 = vunpack.c.h.b16 %v800
      %v825 = vunpack.c.l.b16 %v801
      %v826 = vunpack.c.h.b16 %v801
      %v827 = vunpack.c.l.b16 %v802
      %v828 = vunpack.c.h.b16 %v802
      %v829 = vunpack.c.l.b16 %v803
      %v830 = vunpack.c.h.b16 %v803
      %v831 = vunpack.c.l.b16 %v804
      %v832 = vunpack.c.h.b16 %v804
      %v833 = vunpack.c.l.b16 %v805
      %v834 = vunpack.c.h.b16 %v805
      %v835 = vunpack.c.l.b16 %v806
      %v836 = vunpack.c.h.b16 %v806
      %v837 = vunpack.c.l.b16 %v807
      %v838 = vunpack.c.h.b16 %v807
      %v839 = vpack.c.b16 %v825, %v823
      %v840 = vpack.c.b16 %v826, %v824
      %v841 = vpack.c.b16 %v829, %v827
      %v842 = vpack.c.b16 %v830, %v828
      %v843 = vpack.c.b16 %v833, %v831
      %v844 = vpack.c.b16 %v834, %v832
      %v845 = vpack.c.b16 %v837, %v835
      %v846 = vpack.c.b16 %v838, %v836
      %v856 = vsel %vm377, %v814, 0
      %858 = vmatprep.subr.bf16.mxu0 %v840
      %859 = vmatpush1.bf16.msra.mxu0 %v839
      %860 = vmatprep.subr.bf16.mxu0 %v842
      %861 = vmatpush1.bf16.msra.mxu0 %v841
      %862 = vmatprep.subr.bf16.mxu0 %v844
      %863 = vmatpush1.bf16.msra.mxu0 %v843
      %864 = vmatprep.subr.bf16.mxu0 %v846
      %865 = vmatpush1.bf16.msra.mxu0 %v845
      %866 = vmatprep.subr.bf16.mxu0 0
      %867 = vmatpush1.bf16.msra.mxu0 0
      %868 = vmatprep.subr.bf16.mxu0 0
      %869 = vmatpush1.bf16.msra.mxu0 0
      %870 = vmatprep.subr.bf16.mxu0 0
      %871 = vmatpush1.bf16.msra.mxu0 0
      %872 = vmatprep.subr.bf16.mxu0 0
      %873 = vmatpush1.bf16.msra.mxu0 0
      %874 = vmatprep.subr.bf16.mxu0 0
      %875 = vmatpush1.bf16.msra.mxu0 0
      %876 = vmatprep.subr.bf16.mxu0 0
      %877 = vmatpush1.bf16.msra.mxu0 0
      %878 = vmatprep.subr.bf16.mxu0 0
      %879 = vmatpush1.bf16.msra.mxu0 0
      %880 = vmatprep.subr.bf16.mxu0 0
      %881 = vmatpush1.bf16.msra.mxu0 0
      %882 = vmatprep.subr.bf16.mxu0 0
      %883 = vmatpush1.bf16.msra.mxu0 0
      %884 = vmatprep.subr.bf16.mxu0 0
      %885 = vmatpush1.bf16.msra.mxu0 0
      %886 = vmatprep.subr.bf16.mxu0 0
      %887 = vmatpush1.bf16.msra.mxu0 0
      %888 = vmatprep.subr.bf16.mxu0 0
      %889 = vmatpush1.bf16.msra.mxu0 0
      %890 = vmatprep.mubr.bf16.mxu0 0
      %891 = vmatmul.mubr.bf16.gmra.mrb[0].mxu0 %v856
      %v892 = vpop.f32.mrb[0].mxu0
      %v893 = vadd.f32 0.0, %v892
      %v894 = vpop.f32.mrb[0].mxu0
      %v895 = vadd.f32 0.0, %v894
      %v896 = vpop.f32.mrb[0].mxu0
      %v897 = vpop.f32.mrb[0].mxu0
      %898 = vdwg.mxu0
      %v899 = vadd.f32 %v796, %v893
      %v900 = vadd.f32 %v797, %v895
      %v901 = vld [vmem:[%s2] sm:$0x3]
      %s902 = scalar_lea.vmem %s2, 2
      %v903 = vld [vmem:[%s902] sm:$0x3]
      %v904 = vpack.c.bf16 %v901, %v901
      %v905 = vld [vmem:[#allocation12] sm:$0xf]
      %v906 = vld [vmem:[#allocation12 + $0x4] sm:$0xf]
      %v907 = vld [vmem:[#allocation12 + $0x8] sm:$0xf]
      %v908 = vld [vmem:[#allocation12 + $0xc] sm:$0xf]
      %v909 = vld [vmem:[#allocation16] sm:$0x1]
      %v911 = vlaneseq
      %v912 = vshrl.u32 %v911, 7
      %v913 = vsub.s32 0, %v912
      %v914 = vrot.slane %v909, %v913
      %v920 = vunpack.c.l.b16 %v905
      %v921 = vunpack.c.l.b16 %v906
      %v922 = vunpack.c.l.b16 %v907
      %v923 = vunpack.c.l.b16 %v908
      %v924 = vpack.c.b16 %v921, %v920
      %v925 = vpack.c.b16 %v923, %v922
      %v929 = vsel %vm300, %v904, 0
      %931 = vmatprep.subr.bf16.mxu0 0
      %932 = vmatpush1.bf16.msra.mxu0 %v924
      %933 = vmatprep.subr.bf16.mxu0 0
      %934 = vmatpush1.bf16.msra.mxu0 %v925
      %935 = vmatprep.subr.bf16.mxu0 0
      %936 = vmatpush1.bf16.msra.mxu0 0
      %937 = vmatprep.subr.bf16.mxu0 0
      %938 = vmatpush1.bf16.msra.mxu0 0
      %939 = vmatprep.subr.bf16.mxu0 0
      %940 = vmatpush1.bf16.msra.mxu0 0
      %941 = vmatprep.subr.bf16.mxu0 0
      %942 = vmatpush1.bf16.msra.mxu0 0
      %943 = vmatprep.subr.bf16.mxu0 0
      %944 = vmatpush1.bf16.msra.mxu0 0
      %945 = vmatprep.subr.bf16.mxu0 0
      %946 = vmatpush1.bf16.msra.mxu0 0
      %947 = vmatprep.subr.bf16.mxu0 0
      %948 = vmatpush1.bf16.msra.mxu0 0
      %949 = vmatprep.subr.bf16.mxu0 0
      %950 = vmatpush1.bf16.msra.mxu0 0
      %951 = vmatprep.subr.bf16.mxu0 0
      %952 = vmatpush1.bf16.msra.mxu0 0
      %953 = vmatprep.subr.bf16.mxu0 0
      %954 = vmatpush1.bf16.msra.mxu0 0
      %955 = vmatprep.subr.bf16.mxu0 0
      %956 = vmatpush1.bf16.msra.mxu0 0
      %957 = vmatprep.subr.bf16.mxu0 0
      %958 = vmatpush1.bf16.msra.mxu0 0
      %959 = vmatprep.subr.bf16.mxu0 0
      %960 = vmatpush1.bf16.msra.mxu0 0
      %961 = vmatprep.subr.bf16.mxu0 0
      %962 = vmatpush1.bf16.msra.mxu0 0
      %963 = vmatprep.mubr.bf16.mxu0 0
      %964 = vmatmul.mubr.bf16.gmra.mrb[0].mxu0 %v929
      %v965 = vpop.f32.mrb[0].mxu0
      %v966 = vadd.f32 %v914, %v965
      %v967 = vpop.f32.mrb[0].mxu0
      %v968 = vpop.f32.mrb[0].mxu0
      %v969 = vpop.f32.mrb[0].mxu0
      %970 = vdwg.mxu0
      %v971 = vpack.c.bf16 %v903, %v903
      %v972 = vld [vmem:[#allocation13] sm:$0xf]
      %v973 = vld [vmem:[#allocation13 + $0x4] sm:$0xf]
      %v974 = vld [vmem:[#allocation13 + $0x8] sm:$0xf]
      %v975 = vld [vmem:[#allocation13 + $0xc] sm:$0xf]
      %v976 = vld [vmem:[#allocation18] sm:$0x1]
      %v978 = vlaneseq
      %v979 = vshrl.u32 %v978, 7
      %v980 = vsub.s32 0, %v979
      %v981 = vrot.slane %v976, %v980
      %v987 = vunpack.c.l.b16 %v972
      %v988 = vunpack.c.l.b16 %v973
      %v989 = vunpack.c.l.b16 %v974
      %v990 = vunpack.c.l.b16 %v975
      %v991 = vpack.c.b16 %v988, %v987
      %v992 = vpack.c.b16 %v990, %v989
      %v996 = vsel %vm300, %v971, 0
      %998 = vmatprep.subr.bf16.mxu0 0
      %999 = vmatpush1.bf16.msra.mxu0 %v991
      %1000 = vmatprep.subr.bf16.mxu0 0
      %1001 = vmatpush1.bf16.msra.mxu0 %v992
      %1002 = vmatprep.subr.bf16.mxu0 0
      %1003 = vmatpush1.bf16.msra.mxu0 0
      %1004 = vmatprep.subr.bf16.mxu0 0
      %1005 = vmatpush1.bf16.msra.mxu0 0
      %1006 = vmatprep.subr.bf16.mxu0 0
      %1007 = vmatpush1.bf16.msra.mxu0 0
      %1008 = vmatprep.subr.bf16.mxu0 0
      %1009 = vmatpush1.bf16.msra.mxu0 0
      %1010 = vmatprep.subr.bf16.mxu0 0
      %1011 = vmatpush1.bf16.msra.mxu0 0
      %1012 = vmatprep.subr.bf16.mxu0 0
      %1013 = vmatpush1.bf16.msra.mxu0 0
      %1014 = vmatprep.subr.bf16.mxu0 0
      %1015 = vmatpush1.bf16.msra.mxu0 0
      %1016 = vmatprep.subr.bf16.mxu0 0
      %1017 = vmatpush1.bf16.msra.mxu0 0
      %1018 = vmatprep.subr.bf16.mxu0 0
      %1019 = vmatpush1.bf16.msra.mxu0 0
      %1020 = vmatprep.subr.bf16.mxu0 0
      %1021 = vmatpush1.bf16.msra.mxu0 0
      %1022 = vmatprep.subr.bf16.mxu0 0
      %1023 = vmatpush1.bf16.msra.mxu0 0
      %1024 = vmatprep.subr.bf16.mxu0 0
      %1025 = vmatpush1.bf16.msra.mxu0 0
      %1026 = vmatprep.subr.bf16.mxu0 0
      %1027 = vmatpush1.bf16.msra.mxu0 0
      %1028 = vmatprep.subr.bf16.mxu0 0
      %1029 = vmatpush1.bf16.msra.mxu0 0
      %1030 = vmatprep.mubr.bf16.mxu0 0
      %1031 = vmatmul.mubr.bf16.gmra.mrb[0].mxu0 %v996
      %v1032 = vpop.f32.mrb[0].mxu0
      %v1033 = vadd.f32 %v981, %v1032
      %v1034 = vpop.f32.mrb[0].mxu0
      %v1035 = vpop.f32.mrb[0].mxu0
      %v1036 = vpop.f32.mrb[0].mxu0
      %1037 = vdwg.mxu0
      %v1038 = vadd.f32 %v899, %v966
      %v1039 = vxor.u32 %v1038, 2147483648
      %v1040 = vmul.f32 %v1039, 1.442695
      %v1041 = vpow.pop %v1040
      %v1042 = vadd.f32 %v1041, 1.0
      %v1043 = vrcp.pop %v1042
      %v1044 = vmul.f32 1.0, %v1043
      %1046 = vrot.lane.b32.xlu0 %v966, 64
      %v1047 = vpop.permute.xlu0 %1046
      %v1049 = vmul.f32 %v1044, %v1047
      %1051 = vrot.lane.b32.xlu0 %v1049, 64
      %v1052 = vpop.permute.xlu0 %1051
      %v1054 = vadd.f32 %v899, %v1052
      %v1055 = vtanh.pop %v1054
      %v1056 = vsub.f32 1.0, %v1044
      %1058 = vrot.lane.b32.xlu0 %v1055, 96
      %v1059 = vpop.permute.xlu0 %1058
      %v1061 = vmul.f32 %v1056, %v1059
      %1063 = vrot.lane.b32.xlu0 %v901, 32
      %v1064 = vpop.permute.xlu0 %1063
      %v1066 = vmul.f32 %v1044, %v1064
      %v1067 = vadd.f32 %v1061, %v1066
      %1069 = vrot.lane.b32.xlu0 %v1033, 96
      %v1070 = vpop.permute.xlu0 %1069
      %v1072 = vadd.f32 %v899, %v1070
      %v1073 = vxor.u32 %v1072, 2147483648
      %v1074 = vmul.f32 %v1073, 1.442695
      %v1075 = vpow.pop %v1074
      %v1076 = vadd.f32 %v1075, 1.0
      %v1077 = vrcp.pop %v1076
      %v1078 = vmul.f32 1.0, %v1077
      %v1079 = vadd.f32 %v900, %v1070
      %v1080 = vxor.u32 %v1079, 2147483648
      %v1081 = vmul.f32 %v1080, 1.442695
      %v1082 = vpow.pop %v1081
      %v1083 = vadd.f32 %v1082, 1.0
      %v1084 = vrcp.pop %v1083
      %v1085 = vmul.f32 1.0, %v1084
      %1086 = vrot.lane.b32.xlu0 %v1033, 32
      %v1087 = vpop.permute.xlu0 %1086
      %v1089 = vmul.f32 %v1078, %v1087
      %1091 = vrot.lane.b32.xlu0 %v1089, 64
      %v1092 = vpop.permute.xlu0 %1091
      %v1094 = vadd.f32 %v900, %v1092
      %v1095 = vtanh.pop %v1094
      %v1096 = vsub.f32 1.0, %v1085
      %1098 = vrot.lane.b32.xlu0 %v1095, 96
      %v1099 = vpop.permute.xlu0 %1098
      %v1101 = vmul.f32 %v1096, %v1099
      %v1102 = vmul.f32 %v1085, %v903
      %v1103 = vadd.f32 %v1101, %v1102
      %1105 = vrot.lane.b32.xlu0 %v1067, 96
      %v1106 = vpop.permute.xlu0 %1105
      %vm1108 = vcmask 254976
      %1109 = vst.msk [vmem:[#allocation28] sm:$0x3] %vm1108, %v1106
      %s1110 = scalar_lea.vmem [#allocation28], 2
      %1111 = vst.msk [vmem:[%s1110] sm:$0x3] %vm1108, %v1103
      %v1112 = vld [vmem:[%s19] sm:$0x3]
      %v1113 = vpack.c.bf16 %v1067, %v1067
      %v1114 = vld [vmem:[%s15] sm:$0xff]
      %v1115 = vld [vmem:[%s15 + $0x8] sm:$0xff]
      %v1116 = vld [vmem:[%s15 + $0x10] sm:$0xff]
      %v1117 = vld [vmem:[%s15 + $0x18] sm:$0xff]
      %1119 = vrot.lane.b32.xlu0 %v1113, 96
      %v1120 = vpop.permute.xlu0 %1119
      %v1125 = vunpack.c.l.b16 %v1114
      %v1126 = vunpack.c.h.b16 %v1114
      %v1127 = vunpack.c.l.b16 %v1115
      %v1128 = vunpack.c.h.b16 %v1115
      %v1129 = vunpack.c.l.b16 %v1116
      %v1130 = vunpack.c.h.b16 %v1116
      %v1131 = vunpack.c.l.b16 %v1117
      %v1132 = vunpack.c.h.b16 %v1117
      %v1133 = vpack.c.b16 %v1127, %v1125
      %v1134 = vpack.c.b16 %v1128, %v1126
      %v1135 = vpack.c.b16 %v1131, %v1129
      %v1136 = vpack.c.b16 %v1132, %v1130
      %v1142 = vsel %vm300, %v1120, 0
      %1144 = vmatprep.subr.bf16.mxu0 %v1134
      %1145 = vmatpush1.bf16.msra.mxu0 %v1133
      %1146 = vmatprep.subr.bf16.mxu0 %v1136
      %1147 = vmatpush1.bf16.msra.mxu0 %v1135
      %1148 = vmatprep.subr.bf16.mxu0 0
      %1149 = vmatpush1.bf16.msra.mxu0 0
      %1150 = vmatprep.subr.bf16.mxu0 0
      %1151 = vmatpush1.bf16.msra.mxu0 0
      %1152 = vmatprep.subr.bf16.mxu0 0
      %1153 = vmatpush1.bf16.msra.mxu0 0
      %1154 = vmatprep.subr.bf16.mxu0 0
      %1155 = vmatpush1.bf16.msra.mxu0 0
      %1156 = vmatprep.subr.bf16.mxu0 0
      %1157 = vmatpush1.bf16.msra.mxu0 0
      %1158 = vmatprep.subr.bf16.mxu0 0
      %1159 = vmatpush1.bf16.msra.mxu0 0
      %1160 = vmatprep.subr.bf16.mxu0 0
      %1161 = vmatpush1.bf16.msra.mxu0 0
      %1162 = vmatprep.subr.bf16.mxu0 0
      %1163 = vmatpush1.bf16.msra.mxu0 0
      %1164 = vmatprep.subr.bf16.mxu0 0
      %1165 = vmatpush1.bf16.msra.mxu0 0
      %1166 = vmatprep.subr.bf16.mxu0 0
      %1167 = vmatpush1.bf16.msra.mxu0 0
      %1168 = vmatprep.subr.bf16.mxu0 0
      %1169 = vmatpush1.bf16.msra.mxu0 0
      %1170 = vmatprep.subr.bf16.mxu0 0
      %1171 = vmatpush1.bf16.msra.mxu0 0
      %1172 = vmatprep.subr.bf16.mxu0 0
      %1173 = vmatpush1.bf16.msra.mxu0 0
      %1174 = vmatprep.subr.bf16.mxu0 0
      %1175 = vmatpush1.bf16.msra.mxu0 0
      %1176 = vmatprep.mubr.bf16.mxu0 0
      %1177 = vmatmul.mubr.bf16.gmra.mrb[0].mxu0 %v1142
      %v1178 = vpop.f32.mrb[0].mxu0
      %v1179 = vadd.f32 0.0, %v1178
      %v1180 = vpop.f32.mrb[0].mxu0
      %v1181 = vadd.f32 0.0, %v1180
      %v1182 = vpop.f32.mrb[0].mxu0
      %v1183 = vpop.f32.mrb[0].mxu0
      %1184 = vdwg.mxu0
      %v1186 = vlaneseq
      %v1187 = vshrl.u32 %v1186, 7
      %v1188 = vsub.s32 0, %v1187
      %v1189 = vrot.slane %v1112, %v1188
      %v1190 = vlaneseq
      %v1191 = vshrl.u32 %v1190, 7
      %v1192 = vsub.s32 1, %v1191
      %v1193 = vrot.slane %v1112, %v1192
      %v1196 = vadd.f32 %v1189, %v1179
      %v1197 = vadd.f32 %v1193, %v1181
      %v1198 = vpack.c.bf16 %v1103, %v1103
      %v1199 = vld [vmem:[%s16] sm:$0xff]
      %v1200 = vld [vmem:[%s16 + $0x8] sm:$0xff]
      %v1201 = vld [vmem:[%s16 + $0x10] sm:$0xff]
      %v1202 = vld [vmem:[%s16 + $0x18] sm:$0xff]
      %v1207 = vunpack.c.l.b16 %v1199
      %v1208 = vunpack.c.h.b16 %v1199
      %v1209 = vunpack.c.l.b16 %v1200
      %v1210 = vunpack.c.h.b16 %v1200
      %v1211 = vunpack.c.l.b16 %v1201
      %v1212 = vunpack.c.h.b16 %v1201
      %v1213 = vunpack.c.l.b16 %v1202
      %v1214 = vunpack.c.h.b16 %v1202
      %v1215 = vpack.c.b16 %v1209, %v1207
      %v1216 = vpack.c.b16 %v1210, %v1208
      %v1217 = vpack.c.b16 %v1213, %v1211
      %v1218 = vpack.c.b16 %v1214, %v1212
      %v1224 = vsel %vm300, %v1198, 0
      %1226 = vmatprep.subr.bf16.mxu0 %v1216
      %1227 = vmatpush1.bf16.msra.mxu0 %v1215
      %1228 = vmatprep.subr.bf16.mxu0 %v1218
      %1229 = vmatpush1.bf16.msra.mxu0 %v1217
      %1230 = vmatprep.subr.bf16.mxu0 0
      %1231 = vmatpush1.bf16.msra.mxu0 0
      %1232 = vmatprep.subr.bf16.mxu0 0
      %1233 = vmatpush1.bf16.msra.mxu0 0
      %1234 = vmatprep.subr.bf16.mxu0 0
      %1235 = vmatpush1.bf16.msra.mxu0 0
      %1236 = vmatprep.subr.bf16.mxu0 0
      %1237 = vmatpush1.bf16.msra.mxu0 0
      %1238 = vmatprep.subr.bf16.mxu0 0
      %1239 = vmatpush1.bf16.msra.mxu0 0
      %1240 = vmatprep.subr.bf16.mxu0 0
      %1241 = vmatpush1.bf16.msra.mxu0 0
      %1242 = vmatprep.subr.bf16.mxu0 0
      %1243 = vmatpush1.bf16.msra.mxu0 0
      %1244 = vmatprep.subr.bf16.mxu0 0
      %1245 = vmatpush1.bf16.msra.mxu0 0
      %1246 = vmatprep.subr.bf16.mxu0 0
      %1247 = vmatpush1.bf16.msra.mxu0 0
      %1248 = vmatprep.subr.bf16.mxu0 0
      %1249 = vmatpush1.bf16.msra.mxu0 0
      %1250 = vmatprep.subr.bf16.mxu0 0
      %1251 = vmatpush1.bf16.msra.mxu0 0
      %1252 = vmatprep.subr.bf16.mxu0 0
      %1253 = vmatpush1.bf16.msra.mxu0 0
      %1254 = vmatprep.subr.bf16.mxu0 0
      %1255 = vmatpush1.bf16.msra.mxu0 0
      %1256 = vmatprep.subr.bf16.mxu0 0
      %1257 = vmatpush1.bf16.msra.mxu0 0
      %1258 = vmatprep.mubr.bf16.mxu0 0
      %1259 = vmatmul.mubr.bf16.gmra.mrb[0].mxu0 %v1224
      %v1260 = vpop.f32.mrb[0].mxu0
      %v1261 = vadd.f32 0.0, %v1260
      %v1262 = vpop.f32.mrb[0].mxu0
      %v1263 = vadd.f32 0.0, %v1262
      %v1264 = vpop.f32.mrb[0].mxu0
      %v1265 = vpop.f32.mrb[0].mxu0
      %1266 = vdwg.mxu0
      %v1267 = vadd.f32 %v1196, %v1261
      %v1268 = vadd.f32 %v1197, %v1263
      %s1269 = scalar_lea.vmem %s2, 4
      %v1270 = vld [vmem:[%s1269] sm:$0x3]
      %v1271 = vld [vmem:[%s279] sm:$0x3]
      %v1272 = vpack.c.bf16 %v1270, %v1270
      %v1273 = vld [vmem:[#allocation19] sm:$0xf]
      %v1274 = vld [vmem:[#allocation19 + $0x4] sm:$0xf]
      %v1275 = vld [vmem:[#allocation19 + $0x8] sm:$0xf]
      %v1276 = vld [vmem:[#allocation19 + $0xc] sm:$0xf]
      %v1277 = vld [vmem:[#allocation22] sm:$0x1]
      %v1279 = vlaneseq
      %v1280 = vshrl.u32 %v1279, 7
      %v1281 = vsub.s32 0, %v1280
      %v1282 = vrot.slane %v1277, %v1281
      %v1288 = vunpack.c.l.b16 %v1273
      %v1289 = vunpack.c.l.b16 %v1274
      %v1290 = vunpack.c.l.b16 %v1275
      %v1291 = vunpack.c.l.b16 %v1276
      %v1292 = vpack.c.b16 %v1289, %v1288
      %v1293 = vpack.c.b16 %v1291, %v1290
      %v1297 = vsel %vm300, %v1272, 0
      %1299 = vmatprep.subr.bf16.mxu0 0
      %1300 = vmatpush1.bf16.msra.mxu0 %v1292
      %1301 = vmatprep.subr.bf16.mxu0 0
      %1302 = vmatpush1.bf16.msra.mxu0 %v1293
      %1303 = vmatprep.subr.bf16.mxu0 0
      %1304 = vmatpush1.bf16.msra.mxu0 0
      %1305 = vmatprep.subr.bf16.mxu0 0
      %1306 = vmatpush1.bf16.msra.mxu0 0
      %1307 = vmatprep.subr.bf16.mxu0 0
      %1308 = vmatpush1.bf16.msra.mxu0 0
      %1309 = vmatprep.subr.bf16.mxu0 0
      %1310 = vmatpush1.bf16.msra.mxu0 0
      %1311 = vmatprep.subr.bf16.mxu0 0
      %1312 = vmatpush1.bf16.msra.mxu0 0
      %1313 = vmatprep.subr.bf16.mxu0 0
      %1314 = vmatpush1.bf16.msra.mxu0 0
      %1315 = vmatprep.subr.bf16.mxu0 0
      %1316 = vmatpush1.bf16.msra.mxu0 0
      %1317 = vmatprep.subr.bf16.mxu0 0
      %1318 = vmatpush1.bf16.msra.mxu0 0
      %1319 = vmatprep.subr.bf16.mxu0 0
      %1320 = vmatpush1.bf16.msra.mxu0 0
      %1321 = vmatprep.subr.bf16.mxu0 0
      %1322 = vmatpush1.bf16.msra.mxu0 0
      %1323 = vmatprep.subr.bf16.mxu0 0
      %1324 = vmatpush1.bf16.msra.mxu0 0
      %1325 = vmatprep.subr.bf16.mxu0 0
      %1326 = vmatpush1.bf16.msra.mxu0 0
      %1327 = vmatprep.subr.bf16.mxu0 0
      %1328 = vmatpush1.bf16.msra.mxu0 0
      %1329 = vmatprep.subr.bf16.mxu0 0
      %1330 = vmatpush1.bf16.msra.mxu0 0
      %1331 = vmatprep.mubr.bf16.mxu0 0
      %1332 = vmatmul.mubr.bf16.gmra.mrb[0].mxu0 %v1297
      %v1333 = vpop.f32.mrb[0].mxu0
      %v1334 = vadd.f32 %v1282, %v1333
      %v1335 = vpop.f32.mrb[0].mxu0
      %v1336 = vpop.f32.mrb[0].mxu0
      %v1337 = vpop.f32.mrb[0].mxu0
      %1338 = vdwg.mxu0
      %v1339 = vpack.c.bf16 %v1271, %v1271
      %v1340 = vld [vmem:[#allocation21] sm:$0xf]
      %v1341 = vld [vmem:[#allocation21 + $0x4] sm:$0xf]
      %v1342 = vld [vmem:[#allocation21 + $0x8] sm:$0xf]
      %v1343 = vld [vmem:[#allocation21 + $0xc] sm:$0xf]
      %v1344 = vld [vmem:[#allocation24] sm:$0x1]
      %v1346 = vlaneseq
      %v1347 = vshrl.u32 %v1346, 7
      %v1348 = vsub.s32 0, %v1347
      %v1349 = vrot.slane %v1344, %v1348
      %v1355 = vunpack.c.l.b16 %v1340
      %v1356 = vunpack.c.l.b16 %v1341
      %v1357 = vunpack.c.l.b16 %v1342
      %v1358 = vunpack.c.l.b16 %v1343
      %v1359 = vpack.c.b16 %v1356, %v1355
      %v1360 = vpack.c.b16 %v1358, %v1357
      %v1364 = vsel %vm300, %v1339, 0
      %1366 = vmatprep.subr.bf16.mxu0 0
      %1367 = vmatpush1.bf16.msra.mxu0 %v1359
      %1368 = vmatprep.subr.bf16.mxu0 0
      %1369 = vmatpush1.bf16.msra.mxu0 %v1360
      %1370 = vmatprep.subr.bf16.mxu0 0
      %1371 = vmatpush1.bf16.msra.mxu0 0
      %1372 = vmatprep.subr.bf16.mxu0 0
      %1373 = vmatpush1.bf16.msra.mxu0 0
      %1374 = vmatprep.subr.bf16.mxu0 0
      %1375 = vmatpush1.bf16.msra.mxu0 0
      %1376 = vmatprep.subr.bf16.mxu0 0
      %1377 = vmatpush1.bf16.msra.mxu0 0
      %1378 = vmatprep.subr.bf16.mxu0 0
      %1379 = vmatpush1.bf16.msra.mxu0 0
      %1380 = vmatprep.subr.bf16.mxu0 0
      %1381 = vmatpush1.bf16.msra.mxu0 0
      %1382 = vmatprep.subr.bf16.mxu0 0
      %1383 = vmatpush1.bf16.msra.mxu0 0
      %1384 = vmatprep.subr.bf16.mxu0 0
      %1385 = vmatpush1.bf16.msra.mxu0 0
      %1386 = vmatprep.subr.bf16.mxu0 0
      %1387 = vmatpush1.bf16.msra.mxu0 0
      %1388 = vmatprep.subr.bf16.mxu0 0
      %1389 = vmatpush1.bf16.msra.mxu0 0
      %1390 = vmatprep.subr.bf16.mxu0 0
      %1391 = vmatpush1.bf16.msra.mxu0 0
      %1392 = vmatprep.subr.bf16.mxu0 0
      %1393 = vmatpush1.bf16.msra.mxu0 0
      %1394 = vmatprep.subr.bf16.mxu0 0
      %1395 = vmatpush1.bf16.msra.mxu0 0
      %1396 = vmatprep.subr.bf16.mxu0 0
      %1397 = vmatpush1.bf16.msra.mxu0 0
      %1398 = vmatprep.mubr.bf16.mxu0 0
      %1399 = vmatmul.mubr.bf16.gmra.mrb[0].mxu0 %v1364
      %v1400 = vpop.f32.mrb[0].mxu0
      %v1401 = vadd.f32 %v1349, %v1400
      %v1402 = vpop.f32.mrb[0].mxu0
      %v1403 = vpop.f32.mrb[0].mxu0
      %v1404 = vpop.f32.mrb[0].mxu0
      %1405 = vdwg.mxu0
      %v1406 = vadd.f32 %v1267, %v1334
      %v1407 = vxor.u32 %v1406, 2147483648
      %v1408 = vmul.f32 %v1407, 1.442695
      %v1409 = vpow.pop %v1408
      %v1410 = vadd.f32 %v1409, 1.0
      %v1411 = vrcp.pop %v1410
      %v1412 = vmul.f32 1.0, %v1411
      %1414 = vrot.lane.b32.xlu0 %v1334, 64
      %v1415 = vpop.permute.xlu0 %1414
      %v1417 = vmul.f32 %v1412, %v1415
      %1419 = vrot.lane.b32.xlu0 %v1417, 64
      %v1420 = vpop.permute.xlu0 %1419
      %v1422 = vadd.f32 %v1267, %v1420
      %v1423 = vtanh.pop %v1422
      %v1424 = vsub.f32 1.0, %v1412
      %1426 = vrot.lane.b32.xlu0 %v1423, 96
      %v1427 = vpop.permute.xlu0 %1426
      %v1429 = vmul.f32 %v1424, %v1427
      %1431 = vrot.lane.b32.xlu0 %v1270, 32
      %v1432 = vpop.permute.xlu0 %1431
      %v1434 = vmul.f32 %v1412, %v1432
      %v1435 = vadd.f32 %v1429, %v1434
      %1437 = vrot.lane.b32.xlu0 %v1401, 96
      %v1438 = vpop.permute.xlu0 %1437
      %v1440 = vadd.f32 %v1267, %v1438
      %v1441 = vxor.u32 %v1440, 2147483648
      %v1442 = vmul.f32 %v1441, 1.442695
      %v1443 = vpow.pop %v1442
      %v1444 = vadd.f32 %v1443, 1.0
      %v1445 = vrcp.pop %v1444
      %v1446 = vmul.f32 1.0, %v1445
      %v1447 = vadd.f32 %v1268, %v1438
      %v1448 = vxor.u32 %v1447, 2147483648
      %v1449 = vmul.f32 %v1448, 1.442695
      %v1450 = vpow.pop %v1449
      %v1451 = vadd.f32 %v1450, 1.0
      %v1452 = vrcp.pop %v1451
      %v1453 = vmul.f32 1.0, %v1452
      %1454 = vrot.lane.b32.xlu0 %v1401, 32
      %v1455 = vpop.permute.xlu0 %1454
      %v1457 = vmul.f32 %v1446, %v1455
      %1459 = vrot.lane.b32.xlu0 %v1457, 64
      %v1460 = vpop.permute.xlu0 %1459
      %v1462 = vadd.f32 %v1268, %v1460
      %v1463 = vtanh.pop %v1462
      %v1464 = vsub.f32 1.0, %v1453
      %1466 = vrot.lane.b32.xlu0 %v1463, 96
      %v1467 = vpop.permute.xlu0 %1466
      %v1469 = vmul.f32 %v1464, %v1467
      %v1470 = vmul.f32 %v1453, %v1271
      %v1471 = vadd.f32 %v1469, %v1470
      %1473 = vrot.lane.b32.xlu0 %v1435, 96
      %v1474 = vpop.permute.xlu0 %1473
      %s1476 = scalar_lea.vmem [#allocation28], 4
      %1477 = vst.msk [vmem:[%s1476] sm:$0x3] %vm1108, %v1474
      %s1478 = scalar_lea.vmem [#allocation28], 6
      %1479 = vst.msk [vmem:[%s1478] sm:$0x3] %vm1108, %v1471
    $region157: #{decoder_forward.1} parent=1 // pred_fallthru
      _
    %s1480 = scalar_lea.vmem [#allocation28], 4
    %v1481 = vld [vmem:[%s1480] sm:$0x3]
    %s1482 = scalar_lea.vmem [#allocation28], 6
    %v1483 = vld [vmem:[%s1482] sm:$0x3]
    %v1484 = vpack.c.bf16 %v1481, %v1481
    %v1485 = vld [vmem:[%s22] sm:$0xf]
    %v1486 = vld [vmem:[%s22 + $0x4] sm:$0xf]
    %v1487 = vld [vmem:[%s22 + $0x8] sm:$0xf]
    %v1488 = vld [vmem:[%s22 + $0xc] sm:$0xf]
    %v1489 = vpack.c.bf16 %v1483, %v1483
    %v1490 = vld [vmem:[%s23] sm:$0xf]
    %v1491 = vld [vmem:[%s23 + $0x4] sm:$0xf]
    %v1492 = vld [vmem:[%s23 + $0x8] sm:$0xf]
    %v1493 = vld [vmem:[%s23 + $0xc] sm:$0xf]
    %v1498 = vunpack.c.l.b16 %v1490
    %v1499 = vunpack.c.l.b16 %v1491
    %v1500 = vunpack.c.l.b16 %v1492
    %v1501 = vunpack.c.l.b16 %v1493
    %v1502 = vpack.c.b16 %v1499, %v1498
    %v1503 = vpack.c.b16 %v1501, %v1500
    %vm1506 = vcmask 261120
    %v1508 = vsel %vm1506, %v1489, 0
    %1510 = vmatprep.subr.bf16.mxu0 0
    %1511 = vmatpush1.bf16.msra.mxu0 %v1502
    %1512 = vmatprep.subr.bf16.mxu0 0
    %1513 = vmatpush1.bf16.msra.mxu0 %v1503
    %1514 = vmatprep.subr.bf16.mxu0 0
    %1515 = vmatpush1.bf16.msra.mxu0 0
    %1516 = vmatprep.subr.bf16.mxu0 0
    %1517 = vmatpush1.bf16.msra.mxu0 0
    %1518 = vmatprep.subr.bf16.mxu0 0
    %1519 = vmatpush1.bf16.msra.mxu0 0
    %1520 = vmatprep.subr.bf16.mxu0 0
    %1521 = vmatpush1.bf16.msra.mxu0 0
    %1522 = vmatprep.subr.bf16.mxu0 0
    %1523 = vmatpush1.bf16.msra.mxu0 0
    %1524 = vmatprep.subr.bf16.mxu0 0
    %1525 = vmatpush1.bf16.msra.mxu0 0
    %1526 = vmatprep.subr.bf16.mxu0 0
    %1527 = vmatpush1.bf16.msra.mxu0 0
    %1528 = vmatprep.subr.bf16.mxu0 0
    %1529 = vmatpush1.bf16.msra.mxu0 0
    %1530 = vmatprep.subr.bf16.mxu0 0
    %1531 = vmatpush1.bf16.msra.mxu0 0
    %1532 = vmatprep.subr.bf16.mxu0 0
    %1533 = vmatpush1.bf16.msra.mxu0 0
    %1534 = vmatprep.subr.bf16.mxu0 0
    %1535 = vmatpush1.bf16.msra.mxu0 0
    %1536 = vmatprep.subr.bf16.mxu0 0
    %1537 = vmatpush1.bf16.msra.mxu0 0
    %1538 = vmatprep.subr.bf16.mxu0 0
    %1539 = vmatpush1.bf16.msra.mxu0 0
    %1540 = vmatprep.subr.bf16.mxu0 0
    %1541 = vmatpush1.bf16.msra.mxu0 0
    %1542 = vmatprep.mubr.bf16.mxu0 0
    %1543 = vmatmul.mubr.bf16.gmra.mrb[0].mxu0 %v1508
    %v1544 = vpop.f32.mrb[0].mxu0
    %v1545 = vadd.f32 0.0, %v1544
    %v1546 = vpop.f32.mrb[0].mxu0
    %v1547 = vpop.f32.mrb[0].mxu0
    %v1548 = vpop.f32.mrb[0].mxu0
    %1549 = vdwg.mxu0
    %v1554 = vunpack.c.l.b16 %v1485
    %v1555 = vunpack.c.l.b16 %v1486
    %v1556 = vunpack.c.l.b16 %v1487
    %v1557 = vunpack.c.l.b16 %v1488
    %v1558 = vpack.c.b16 %v1555, %v1554
    %v1559 = vpack.c.b16 %v1557, %v1556
    %v1563 = vsel %vm1506, %v1484, 0
    %1565 = vmatprep.subr.bf16.mxu0 0
    %1566 = vmatpush1.bf16.msra.mxu0 %v1558
    %1567 = vmatprep.subr.bf16.mxu0 0
    %1568 = vmatpush1.bf16.msra.mxu0 %v1559
    %1569 = vmatprep.subr.bf16.mxu0 0
    %1570 = vmatpush1.bf16.msra.mxu0 0
    %1571 = vmatprep.subr.bf16.mxu0 0
    %1572 = vmatpush1.bf16.msra.mxu0 0
    %1573 = vmatprep.subr.bf16.mxu0 0
    %1574 = vmatpush1.bf16.msra.mxu0 0
    %1575 = vmatprep.subr.bf16.mxu0 0
    %1576 = vmatpush1.bf16.msra.mxu0 0
    %1577 = vmatprep.subr.bf16.mxu0 0
    %1578 = vmatpush1.bf16.msra.mxu0 0
    %1579 = vmatprep.subr.bf16.mxu0 0
    %1580 = vmatpush1.bf16.msra.mxu0 0
    %1581 = vmatprep.subr.bf16.mxu0 0
    %1582 = vmatpush1.bf16.msra.mxu0 0
    %1583 = vmatprep.subr.bf16.mxu0 0
    %1584 = vmatpush1.bf16.msra.mxu0 0
    %1585 = vmatprep.subr.bf16.mxu0 0
    %1586 = vmatpush1.bf16.msra.mxu0 0
    %1587 = vmatprep.subr.bf16.mxu0 0
    %1588 = vmatpush1.bf16.msra.mxu0 0
    %1589 = vmatprep.subr.bf16.mxu0 0
    %1590 = vmatpush1.bf16.msra.mxu0 0
    %1591 = vmatprep.subr.bf16.mxu0 0
    %1592 = vmatpush1.bf16.msra.mxu0 0
    %1593 = vmatprep.subr.bf16.mxu0 0
    %1594 = vmatpush1.bf16.msra.mxu0 0
    %1595 = vmatprep.subr.bf16.mxu0 0
    %1596 = vmatpush1.bf16.msra.mxu0 0
    %1597 = vmatprep.mubr.bf16.mxu0 0
    %1598 = vmatmul.mubr.bf16.gmra.mrb[0].mxu0 %v1563
    %v1599 = vpop.f32.mrb[0].mxu0
    %v1600 = vadd.f32 %v1545, %v1599
    %v1601 = vpop.f32.mrb[0].mxu0
    %v1602 = vpop.f32.mrb[0].mxu0
    %v1603 = vpop.f32.mrb[0].mxu0
    %1604 = vdwg.mxu0
    %v1605 = vld [vmem:[#allocation25] sm:$0x1]
    %v1607 = vlaneseq
    %v1608 = vshrl.u32 %v1607, 7
    %v1609 = vsub.s32 0, %v1608
    %v1610 = vrot.slane %v1605, %v1609
    %v1612 = vadd.f32 %v1600, %v1610
    %vm1613 = vcmask 123904
    %1614 = vst.msk [vmem:[#allocation27] sm:$0x3] %vm1613, %v1612
    // Predicated region
    $region158: #{decoder_forward.1} parent=1 // pred_check
      _
    $region159: #{decoder_forward.1} parent=1 // pred_check_branch
      %1616 = sbr.rel (0) target = $region161
    $region160: #{decoder_forward.1} parent=1 // pred_region
      %s1618 = ssub.s32 32, 32
      %1619 = vsyncadd [#allocation6], %s1618
      %s1621 = sshll.u32 [#allocation27], 4
      %s1622 = int_to_ptr.vmem [resolvable:$true] %s1621
      %1624 = dma.vmem_to_hbm [thread:$0]  %s1622, 32, %s25, [#allocation6]
    $region161: #{decoder_forward.1} parent=1 // pred_fallthru
      _
    // Predicated region
    $region162: #{decoder_forward.1} parent=1 // pred_check
      _
    $region163: #{decoder_forward.1} parent=1 // pred_check_branch
      %1626 = sbr.rel (0) target = $region165
    $region164: #{decoder_forward.1} parent=1 // pred_region
      %s1628 = ssub.s32 128, 128
      %1629 = vsyncadd [#allocation29], %s1628
      %s1630 = sshll.u32 [#allocation28], 4
      %s1631 = int_to_ptr.vmem [resolvable:$true] %s1630
      %1636 = dma.vmem_to_hbm [thread:$0]  %s1631, 128, %s26, [#allocation29], 32, 32, 2
    $region165: #{decoder_forward.1} parent=1 // pred_fallthru
      _
    // Predicated region
    $region166: #{decoder_forward.1} parent=1 // pred_check
      _
    $region167: #{decoder_forward.1} parent=1 // pred_check_branch
      %1638 = sbr.rel (0) target = $region169
    $region168: #{decoder_forward.1} parent=1 // pred_region
      %1639 = dma.done [#allocation6], 32
    $region169: #{decoder_forward.1} parent=1 // pred_fallthru
      _
    // Predicated region
    $region170: #{decoder_forward.1} parent=1 // pred_check
      _
    $region171: #{decoder_forward.1} parent=1 // pred_check_branch
      %1641 = sbr.rel (0) target = $region173
    $region172: #{decoder_forward.1} parent=1 // pred_region
      %1642 = dma.done [#allocation29], 128
    $region173: #{decoder_forward.1} parent=1 // pred_fallthru
      _
    %1643 = vsyncpa [#allocation5], 1
    %1644 = vsyncpa [#allocation8], 1
    %1645 = vsyncpa [#allocation11], 1
    %1646 = vsyncpa [#allocation14], 1
    %1647 = vsyncpa [#allocation17], 1
    %1648 = vsyncpa [#allocation20], 1
    %1649 = vsyncpa [#allocation23], 1
    %1650 = vsyncpa [#allocation26], 1
    %1651 = vsyncpa [#allocation6], 1
    %1652 = vsyncpa [#allocation29], 1

</llo_original>
